<compile_context>
chip_gen: v5e
topology: v5e:2x2
jax: 0.10.0
libtpu: 0.0.40
codegen_flags: <defaults>
</compile_context>

<pallas_src>
import functools

import jax
import jax.numpy as jnp
from jax.experimental import pallas as pl
from jax.experimental.pallas import tpu as pltpu


# ----------------------------------------------------------------------------
# Fused Pallas kernel: all RNN layers + FC head in one call, everything in VMEM.
# ----------------------------------------------------------------------------
def _fused_rnn_kernel(x_ref, wih_ref, whh_ref, b_ref, fcw_ref, fcb_ref,
                      out_ref, pre_ref, act_ref, *, T, B_pad, num_layers,
                      num_dirs, D):
    """Multi-layer (optionally bidirectional) Elman RNN + Linear head.

    x_ref   : (T*B_pad, D)          time-major flattened input (row = t*B_pad + b)
    wih_ref : (D + (L-1)*K, K)      packed input-projection weights, K = 128*dirs
    whh_ref : (L*K, K)              packed (block-diagonal) recurrent weights
    b_ref   : (1, L*K)              packed biases (b_ih + b_hh), zero in padded lanes
    fcw_ref : (K, C_pad), fcb_ref : (1, C_pad)   lane-dense FC head
    out_ref : (T*B_pad, C_pad)      lane-dense logits
    pre_ref / act_ref : (T*B_pad, K) VMEM scratch (pre-activations / layer output)
    """
    f32 = jnp.float32
    K = 128 * num_dirs

    for layer in range(num_layers):
        # ---- hoisted input projection: ONE (T*B_pad, Din) @ (Din, K) MXU matmul ----
        if layer == 0:
            src = x_ref[...]
            w_lo, d_in = 0, D
        else:
            src = act_ref[...]
            w_lo, d_in = D + (layer - 1) * K, K
        pre_ref[...] = (
            jnp.dot(src, wih_ref[w_lo:w_lo + d_in, :], preferred_element_type=f32)
            + b_ref[:, layer * K:(layer + 1) * K]
        )

        # ---- recurrence: one (B_pad, K) @ (K, K) matmul + tanh per timestep ----
        # All slices below are (8,128)-aligned -> full-vreg, unmasked accesses.
        h = jnp.zeros((B_pad, K), f32)
        for t in range(T):
            if num_dirs == 1:
                p = pre_ref[t * B_pad:(t + 1) * B_pad, :]
            else:
                rt = T - 1 - t          # backward direction walks time reversed
                p = jnp.concatenate(
                    [pre_ref[t * B_pad:(t + 1) * B_pad, 0:128],
                     pre_ref[rt * B_pad:(rt + 1) * B_pad, 128:256]], axis=-1)
            # W_hh slice taken from the ref inside the dot (not hoisted across the
            # unrolled loop) to keep vreg live ranges short.
            h = jnp.tanh(
                p + jnp.dot(h, whh_ref[layer * K:(layer + 1) * K, :],
                            preferred_element_type=f32))
            if num_dirs == 1:
                act_ref[t * B_pad:(t + 1) * B_pad, :] = h
            else:
                rt = T - 1 - t
                act_ref[t * B_pad:(t + 1) * B_pad, 0:128] = h[:, 0:128]
                act_ref[rt * B_pad:(rt + 1) * B_pad, 128:256] = h[:, 128:256]

    # ---- FC head epilogue: single lane-dense (T*B_pad, C_pad) store ----
    out_ref[...] = (
        jnp.dot(act_ref[...], fcw_ref[...], preferred_element_type=f32)
        + fcb_ref[...]
    ).astype(out_ref.dtype)


# ----------------------------------------------------------------------------
# Parameter packing (done once, outside the jitted forward).
# ----------------------------------------------------------------------------
def pack_params(rnn_params, fc_w, fc_b, *, bidirectional):
    num_layers = len(rnn_params)
    num_dirs = 2 if bidirectional else 1
    H = rnn_params[0][0][1].shape[0]                 # w_hh: (H, H)
    D = rnn_params[0][0][0].shape[1]                 # layer-0 w_ih: (H, D)
    K = 128 * num_dirs
    C = fc_w.shape[0]
    C_pad = 128 * pl.cdiv(C, 128)

    wih_all = jnp.zeros((D + (num_layers - 1) * K, K), jnp.float32)
    whh_all = jnp.zeros((num_layers * K, K), jnp.float32)
    bias_all = jnp.zeros((1, num_layers * K), jnp.float32)

    for layer in range(num_layers):
        row0 = 0 if layer == 0 else D + (layer - 1) * K
        for d in range(num_dirs):
            w_ih, w_hh, b_ih, b_hh = [jnp.asarray(a, jnp.float32)
                                      for a in rnn_params[layer][d]]
            wt = w_ih.T                              # (d_in, H)
            if layer == 0:
                wih_all = wih_all.at[0:D, d * 128:d * 128 + H].set(wt)
            else:
                # input of layer>=1 is [h_fwd | h_bwd]; in padded layout block s
                # holds direction s's hidden in its first H lanes.
                for s in range(num_dirs):
                    wih_all = wih_all.at[
                        row0 + s * 128: row0 + s * 128 + H,
                        d * 128: d * 128 + H].set(wt[s * H:(s + 1) * H, :])
            whh_all = whh_all.at[
                layer * K + d * 128: layer * K + d * 128 + H,
                d * 128: d * 128 + H].set(w_hh.T)            # block-diagonal
            bias_all = bias_all.at[
                0, layer * K + d * 128: layer * K + d * 128 + H].set(b_ih + b_hh)

    fcw_pad = jnp.zeros((K, C_pad), jnp.float32)
    fct = jnp.asarray(fc_w, jnp.float32).T           # (H*num_dirs, C)
    for d in range(num_dirs):
        fcw_pad = fcw_pad.at[d * 128:d * 128 + H, :C].set(fct[d * H:(d + 1) * H, :])
    fcb_pad = jnp.zeros((1, C_pad), jnp.float32).at[0, :C].set(
        jnp.asarray(fc_b, jnp.float32))
    return wih_all, whh_all, bias_all, fcw_pad, fcb_pad


# ----------------------------------------------------------------------------
# Jitted forward: one pallas_call, layout ops fused around it.
# ----------------------------------------------------------------------------
@functools.partial(jax.jit, static_argnames=("num_classes",))
def rnn_model_forward(x_btd, wih_all, whh_all, bias_all, fcw_pad, fcb_pad,
                      *, num_classes):
    x = jnp.asarray(x_btd, jnp.float32)
    B, T, D = x.shape
    K = whh_all.shape[-1]
    num_dirs = K // 128
    num_layers = whh_all.shape[0] // K
    C_pad = fcw_pad.shape[-1]
    B_pad = 8 * pl.cdiv(B, 8)                        # sublane-aligned step slab

    # (B,T,D) -> pad batch to B_pad -> time-major (T*B_pad, D); one fused XLA op.
    x_p = jnp.pad(x, ((0, B_pad - B), (0, 0), (0, 0)))
    x_flat = jnp.transpose(x_p, (1, 0, 2)).reshape(T * B_pad, D)

    kernel = functools.partial(
        _fused_rnn_kernel,
        T=T, B_pad=B_pad, num_layers=num_layers, num_dirs=num_dirs, D=D,
    )
    vmem = pl.BlockSpec(memory_space=pltpu.MemorySpace.VMEM)

    out_flat = pl.pallas_call(
        kernel,
        out_shape=jax.ShapeDtypeStruct((T * B_pad, C_pad), jnp.float32),
        in_specs=[vmem] * 6,
        out_specs=vmem,
        scratch_shapes=[
            pltpu.VMEM((T * B_pad, K), jnp.float32),   # pre-activations
            pltpu.VMEM((T * B_pad, K), jnp.float32),   # layer activations
        ],
    )(x_flat, wih_all, whh_all, bias_all, fcw_pad, fcb_pad)

    out = out_flat.reshape(T, B_pad, C_pad)[:, :B, :num_classes]
    return jnp.transpose(out, (1, 0, 2))             # (B, T, num_classes)


# ----------------------------------------------------------------------------
# Pure-JAX reference (for verification)
# ----------------------------------------------------------------------------
def rnn_model_reference(x_btd, rnn_params, fc_w, fc_b, *, bidirectional=False):
    x_tbd = jnp.transpose(jnp.asarray(x_btd, jnp.float32), (1, 0, 2))

    def run_dir(seq, w_ih, w_hh, b_ih, b_hh):
        B = seq.shape[1]
        H = w_hh.shape[0]

        def step(h, x):
            h_new = jnp.tanh(x @ w_ih.T + b_ih + h @ w_hh.T + b_hh)
            return h_new, h_new

        _, ys = jax.lax.scan(step, jnp.zeros((B, H), jnp.float32), seq)
        return ys

    layer_in = x_tbd
    for dir_params in rnn_params:
        outs = [run_dir(layer_in, *dir_params[0])]
        if bidirectional:
            outs.append(run_dir(layer_in[::-1], *dir_params[1])[::-1])
        layer_in = jnp.concatenate(outs, axis=-1) if len(outs) > 1 else outs[0]

    logits = layer_in @ fc_w.T + fc_b
    return jnp.transpose(logits, (1, 0, 2))


# ----------------------------------------------------------------------------
# Deterministic parameter init (PyTorch-style uniform(-1/sqrt(H), 1/sqrt(H)))
# ----------------------------------------------------------------------------
def init_params(key, input_size, hidden_size, num_layers, num_classes, bidirectional):
    num_dirs = 2 if bidirectional else 1
    k_rnn = 1.0 / jnp.sqrt(hidden_size)
    params = []
    for layer in range(num_layers):
        d_in = input_size if layer == 0 else hidden_size * num_dirs
        dirs = []
        for _ in range(num_dirs):
            key, k1, k2, k3, k4 = jax.random.split(key, 5)
            w_ih = jax.random.uniform(k1, (hidden_size, d_in), jnp.float32, -k_rnn, k_rnn)
            w_hh = jax.random.uniform(k2, (hidden_size, hidden_size), jnp.float32, -k_rnn, k_rnn)
            b_ih = jax.random.uniform(k3, (hidden_size,), jnp.float32, -k_rnn, k_rnn)
            b_hh = jax.random.uniform(k4, (hidden_size,), jnp.float32, -k_rnn, k_rnn)
            dirs.append((w_ih, w_hh, b_ih, b_hh))
        params.append(dirs)

    fc_in = hidden_size * num_dirs
    k_fc = 1.0 / jnp.sqrt(fc_in)
    key, k1, k2 = jax.random.split(key, 3)
    fc_w = jax.random.uniform(k1, (num_classes, fc_in), jnp.float32, -k_fc, k_fc)
    fc_b = jax.random.uniform(k2, (num_classes,), jnp.float32, -k_fc, k_fc)
    return params, fc_w, fc_b, key


def _check(bidirectional, key):
    INPUT_SIZE, HIDDEN_SIZE, NUM_LAYERS, NUM_CLASSES = 512, 32, 2, 2
    B, T = 2, 8
    rnn_params, fc_w, fc_b, key = init_params(
        key, INPUT_SIZE, HIDDEN_SIZE, NUM_LAYERS, NUM_CLASSES, bidirectional)
    key, kx = jax.random.split(key)
    x = jax.random.normal(kx, (B, T, INPUT_SIZE), jnp.float32)

    packed = pack_params(rnn_params, fc_w, fc_b, bidirectional=bidirectional)
    out = rnn_model_forward(x, *packed, num_classes=NUM_CLASSES)
    out = jax.block_until_ready(out)

    ref = jax.block_until_ready(
        rnn_model_reference(x, rnn_params, fc_w, fc_b, bidirectional=bidirectional))

    assert out.shape == (B, T, NUM_CLASSES), out.shape
    assert jnp.allclose(out, ref, atol=1e-4, rtol=1e-4), float(jnp.abs(out - ref).max())
    return key


# ----------------------------------------------------------------------------
if __name__ == "__main__":
    key = jax.random.PRNGKey(0)
    # Module config: args.pretrained_model ~ 'resnet18' => input_size=512;
    # PyTorch module default is bidirectional=False.
    key = _check(bidirectional=False, key=key)
    # Extra coverage for the fused bidirectional path (block-diagonal W_hh).
    key = _check(bidirectional=True, key=key)
    print("KERNEL_OK")
</pallas_src>

<mosaic_0001>
module attributes {stable_mosaic.version = 11 : i64} {
  func.func @_fused_rnn_kernel(%arg0: memref<64x512xf32, #tpu.memory_space<vmem>>, %arg1: memref<640x128xf32, #tpu.memory_space<vmem>>, %arg2: memref<256x128xf32, #tpu.memory_space<vmem>>, %arg3: memref<1x256xf32, #tpu.memory_space<vmem>>, %arg4: memref<128x128xf32, #tpu.memory_space<vmem>>, %arg5: memref<1x128xf32, #tpu.memory_space<vmem>>, %arg6: memref<64x128xf32, #tpu.memory_space<vmem>>, %arg7: memref<64x128xf32, #tpu.memory_space<vmem>>, %arg8: memref<64x128xf32, #tpu.memory_space<vmem>>) attributes {dimension_semantics = [], scalar_prefetch = 0 : i64, scratch_operands = 2 : i64, tpu.core_type = #tpu.core_type<tc>} {
    %c0 = arith.constant 0 : index
    %c0_0 = arith.constant 0 : index
    %0 = vector.load %arg0[%c0, %c0_0] : memref<64x512xf32, #tpu.memory_space<vmem>>, vector<64x512xf32>
    %c0_1 = arith.constant 0 : index
    %c0_2 = arith.constant 0 : index
    %1 = vector.load %arg1[%c0_1, %c0_2] : memref<640x128xf32, #tpu.memory_space<vmem>>, vector<512x128xf32>
    %cst = arith.constant dense<0.000000e+00> : vector<64x128xf32>
    %2 = tpu.matmul %0, %1, %cst {dimension_numbers = #tpu.dot_dimension_numbers<[1], [0], [0], [1], [0, 0, 1, 1], [], []>} : vector<64x512xf32>, vector<512x128xf32>, vector<64x128xf32> -> vector<64x128xf32>
    %c0_3 = arith.constant 0 : index
    %c0_4 = arith.constant 0 : index
    %3 = vector.load %arg3[%c0_3, %c0_4] : memref<1x256xf32, #tpu.memory_space<vmem>>, vector<1x128xf32>
    %4 = vector.broadcast %3 : vector<1x128xf32> to vector<64x128xf32>
    %5 = arith.addf %2, %4 : vector<64x128xf32>
    %c0_5 = arith.constant 0 : index
    %c0_6 = arith.constant 0 : index
    %6 = vector.load %arg7[%c0_5, %c0_6] : memref<64x128xf32, #tpu.memory_space<vmem>>, vector<64x128xf32>
    tpu.vector_store %arg7[%c0_5, %c0_6], %5 {strides = array<i32>} : memref<64x128xf32, #tpu.memory_space<vmem>>, vector<64x128xf32>,
    %cst_7 = arith.constant 0.000000e+00 : f32
    %7 = vector.broadcast %cst_7 : f32 to vector<8x128xf32>
    %c0_8 = arith.constant 0 : index
    %c0_9 = arith.constant 0 : index
    %8 = vector.load %arg7[%c0_8, %c0_9] : memref<64x128xf32, #tpu.memory_space<vmem>>, vector<8x128xf32>
    %c0_10 = arith.constant 0 : index
    %c0_11 = arith.constant 0 : index
    %9 = vector.load %arg2[%c0_10, %c0_11] : memref<256x128xf32, #tpu.memory_space<vmem>>, vector<128x128xf32>
    %cst_12 = arith.constant dense<0.000000e+00> : vector<8x128xf32>
    %10 = tpu.matmul %7, %9, %cst_12 {dimension_numbers = #tpu.dot_dimension_numbers<[1], [0], [0], [1], [0, 0, 1, 1], [], []>} : vector<8x128xf32>, vector<128x128xf32>, vector<8x128xf32> -> vector<8x128xf32>
    %11 = arith.addf %8, %10 : vector<8x128xf32>
    %12 = math.tanh %11 : vector<8x128xf32>
    %c0_13 = arith.constant 0 : index
    %c0_14 = arith.constant 0 : index
    %13 = vector.load %arg8[%c0_13, %c0_14] : memref<64x128xf32, #tpu.memory_space<vmem>>, vector<8x128xf32>
    tpu.vector_store %arg8[%c0_13, %c0_14], %12 {strides = array<i32>} : memref<64x128xf32, #tpu.memory_space<vmem>>, vector<8x128xf32>,
    %c8 = arith.constant 8 : index
    %c0_15 = arith.constant 0 : index
    %14 = vector.load %arg7[%c8, %c0_15] : memref<64x128xf32, #tpu.memory_space<vmem>>, vector<8x128xf32>
    %c0_16 = arith.constant 0 : index
    %c0_17 = arith.constant 0 : index
    %15 = vector.load %arg2[%c0_16, %c0_17] : memref<256x128xf32, #tpu.memory_space<vmem>>, vector<128x128xf32>
    %cst_18 = arith.constant dense<0.000000e+00> : vector<8x128xf32>
    %16 = tpu.matmul %12, %15, %cst_18 {dimension_numbers = #tpu.dot_dimension_numbers<[1], [0], [0], [1], [0, 0, 1, 1], [], []>} : vector<8x128xf32>, vector<128x128xf32>, vector<8x128xf32> -> vector<8x128xf32>
    %17 = arith.addf %14, %16 : vector<8x128xf32>
    %18 = math.tanh %17 : vector<8x128xf32>
    %c8_19 = arith.constant 8 : index
    %c0_20 = arith.constant 0 : index
    %19 = vector.load %arg8[%c8_19, %c0_20] : memref<64x128xf32, #tpu.memory_space<vmem>>, vector<8x128xf32>
    tpu.vector_store %arg8[%c8_19, %c0_20], %18 {strides = array<i32>} : memref<64x128xf32, #tpu.memory_space<vmem>>, vector<8x128xf32>,
    %c16 = arith.constant 16 : index
    %c0_21 = arith.constant 0 : index
    %20 = vector.load %arg7[%c16, %c0_21] : memref<64x128xf32, #tpu.memory_space<vmem>>, vector<8x128xf32>
    %c0_22 = arith.constant 0 : index
    %c0_23 = arith.constant 0 : index
    %21 = vector.load %arg2[%c0_22, %c0_23] : memref<256x128xf32, #tpu.memory_space<vmem>>, vector<128x128xf32>
    %cst_24 = arith.constant dense<0.000000e+00> : vector<8x128xf32>
    %22 = tpu.matmul %18, %21, %cst_24 {dimension_numbers = #tpu.dot_dimension_numbers<[1], [0], [0], [1], [0, 0, 1, 1], [], []>} : vector<8x128xf32>, vector<128x128xf32>, vector<8x128xf32> -> vector<8x128xf32>
    %23 = arith.addf %20, %22 : vector<8x128xf32>
    %24 = math.tanh %23 : vector<8x128xf32>
    %c16_25 = arith.constant 16 : index
    %c0_26 = arith.constant 0 : index
    %25 = vector.load %arg8[%c16_25, %c0_26] : memref<64x128xf32, #tpu.memory_space<vmem>>, vector<8x128xf32>
    tpu.vector_store %arg8[%c16_25, %c0_26], %24 {strides = array<i32>} : memref<64x128xf32, #tpu.memory_space<vmem>>, vector<8x128xf32>,
    %c24 = arith.constant 24 : index
    %c0_27 = arith.constant 0 : index
    %26 = vector.load %arg7[%c24, %c0_27] : memref<64x128xf32, #tpu.memory_space<vmem>>, vector<8x128xf32>
    %c0_28 = arith.constant 0 : index
    %c0_29 = arith.constant 0 : index
    %27 = vector.load %arg2[%c0_28, %c0_29] : memref<256x128xf32, #tpu.memory_space<vmem>>, vector<128x128xf32>
    %cst_30 = arith.constant dense<0.000000e+00> : vector<8x128xf32>
    %28 = tpu.matmul %24, %27, %cst_30 {dimension_numbers = #tpu.dot_dimension_numbers<[1], [0], [0], [1], [0, 0, 1, 1], [], []>} : vector<8x128xf32>, vector<128x128xf32>, vector<8x128xf32> -> vector<8x128xf32>
    %29 = arith.addf %26, %28 : vector<8x128xf32>
    %30 = math.tanh %29 : vector<8x128xf32>
    %c24_31 = arith.constant 24 : index
    %c0_32 = arith.constant 0 : index
    %31 = vector.load %arg8[%c24_31, %c0_32] : memref<64x128xf32, #tpu.memory_space<vmem>>, vector<8x128xf32>
    tpu.vector_store %arg8[%c24_31, %c0_32], %30 {strides = array<i32>} : memref<64x128xf32, #tpu.memory_space<vmem>>, vector<8x128xf32>,
    %c32 = arith.constant 32 : index
    %c0_33 = arith.constant 0 : index
    %32 = vector.load %arg7[%c32, %c0_33] : memref<64x128xf32, #tpu.memory_space<vmem>>, vector<8x128xf32>
    %c0_34 = arith.constant 0 : index
    %c0_35 = arith.constant 0 : index
    %33 = vector.load %arg2[%c0_34, %c0_35] : memref<256x128xf32, #tpu.memory_space<vmem>>, vector<128x128xf32>
    %cst_36 = arith.constant dense<0.000000e+00> : vector<8x128xf32>
    %34 = tpu.matmul %30, %33, %cst_36 {dimension_numbers = #tpu.dot_dimension_numbers<[1], [0], [0], [1], [0, 0, 1, 1], [], []>} : vector<8x128xf32>, vector<128x128xf32>, vector<8x128xf32> -> vector<8x128xf32>
    %35 = arith.addf %32, %34 : vector<8x128xf32>
    %36 = math.tanh %35 : vector<8x128xf32>
    %c32_37 = arith.constant 32 : index
    %c0_38 = arith.constant 0 : index
    %37 = vector.load %arg8[%c32_37, %c0_38] : memref<64x128xf32, #tpu.memory_space<vmem>>, vector<8x128xf32>
    tpu.vector_store %arg8[%c32_37, %c0_38], %36 {strides = array<i32>} : memref<64x128xf32, #tpu.memory_space<vmem>>, vector<8x128xf32>,
    %c40 = arith.constant 40 : index
    %c0_39 = arith.constant 0 : index
    %38 = vector.load %arg7[%c40, %c0_39] : memref<64x128xf32, #tpu.memory_space<vmem>>, vector<8x128xf32>
    %c0_40 = arith.constant 0 : index
    %c0_41 = arith.constant 0 : index
    %39 = vector.load %arg2[%c0_40, %c0_41] : memref<256x128xf32, #tpu.memory_space<vmem>>, vector<128x128xf32>
    %cst_42 = arith.constant dense<0.000000e+00> : vector<8x128xf32>
    %40 = tpu.matmul %36, %39, %cst_42 {dimension_numbers = #tpu.dot_dimension_numbers<[1], [0], [0], [1], [0, 0, 1, 1], [], []>} : vector<8x128xf32>, vector<128x128xf32>, vector<8x128xf32> -> vector<8x128xf32>
    %41 = arith.addf %38, %40 : vector<8x128xf32>
    %42 = math.tanh %41 : vector<8x128xf32>
    %c40_43 = arith.constant 40 : index
    %c0_44 = arith.constant 0 : index
    %43 = vector.load %arg8[%c40_43, %c0_44] : memref<64x128xf32, #tpu.memory_space<vmem>>, vector<8x128xf32>
    tpu.vector_store %arg8[%c40_43, %c0_44], %42 {strides = array<i32>} : memref<64x128xf32, #tpu.memory_space<vmem>>, vector<8x128xf32>,
    %c48 = arith.constant 48 : index
    %c0_45 = arith.constant 0 : index
    %44 = vector.load %arg7[%c48, %c0_45] : memref<64x128xf32, #tpu.memory_space<vmem>>, vector<8x128xf32>
    %c0_46 = arith.constant 0 : index
    %c0_47 = arith.constant 0 : index
    %45 = vector.load %arg2[%c0_46, %c0_47] : memref<256x128xf32, #tpu.memory_space<vmem>>, vector<128x128xf32>
    %cst_48 = arith.constant dense<0.000000e+00> : vector<8x128xf32>
    %46 = tpu.matmul %42, %45, %cst_48 {dimension_numbers = #tpu.dot_dimension_numbers<[1], [0], [0], [1], [0, 0, 1, 1], [], []>} : vector<8x128xf32>, vector<128x128xf32>, vector<8x128xf32> -> vector<8x128xf32>
    %47 = arith.addf %44, %46 : vector<8x128xf32>
    %48 = math.tanh %47 : vector<8x128xf32>
    %c48_49 = arith.constant 48 : index
    %c0_50 = arith.constant 0 : index
    %49 = vector.load %arg8[%c48_49, %c0_50] : memref<64x128xf32, #tpu.memory_space<vmem>>, vector<8x128xf32>
    tpu.vector_store %arg8[%c48_49, %c0_50], %48 {strides = array<i32>} : memref<64x128xf32, #tpu.memory_space<vmem>>, vector<8x128xf32>,
    %c56 = arith.constant 56 : index
    %c0_51 = arith.constant 0 : index
    %50 = vector.load %arg7[%c56, %c0_51] : memref<64x128xf32, #tpu.memory_space<vmem>>, vector<8x128xf32>
    %c0_52 = arith.constant 0 : index
    %c0_53 = arith.constant 0 : index
    %51 = vector.load %arg2[%c0_52, %c0_53] : memref<256x128xf32, #tpu.memory_space<vmem>>, vector<128x128xf32>
    %cst_54 = arith.constant dense<0.000000e+00> : vector<8x128xf32>
    %52 = tpu.matmul %48, %51, %cst_54 {dimension_numbers = #tpu.dot_dimension_numbers<[1], [0], [0], [1], [0, 0, 1, 1], [], []>} : vector<8x128xf32>, vector<128x128xf32>, vector<8x128xf32> -> vector<8x128xf32>
    %53 = arith.addf %50, %52 : vector<8x128xf32>
    %54 = math.tanh %53 : vector<8x128xf32>
    %c56_55 = arith.constant 56 : index
    %c0_56 = arith.constant 0 : index
    %55 = vector.load %arg8[%c56_55, %c0_56] : memref<64x128xf32, #tpu.memory_space<vmem>>, vector<8x128xf32>
    tpu.vector_store %arg8[%c56_55, %c0_56], %54 {strides = array<i32>} : memref<64x128xf32, #tpu.memory_space<vmem>>, vector<8x128xf32>,
    %c0_57 = arith.constant 0 : index
    %c0_58 = arith.constant 0 : index
    %56 = vector.load %arg8[%c0_57, %c0_58] : memref<64x128xf32, #tpu.memory_space<vmem>>, vector<64x128xf32>
    %c512 = arith.constant 512 : index
    %c0_59 = arith.constant 0 : index
    %57 = vector.load %arg1[%c512, %c0_59] : memref<640x128xf32, #tpu.memory_space<vmem>>, vector<128x128xf32>
    %cst_60 = arith.constant dense<0.000000e+00> : vector<64x128xf32>
    %58 = tpu.matmul %56, %57, %cst_60 {dimension_numbers = #tpu.dot_dimension_numbers<[1], [0], [0], [1], [0, 0, 1, 1], [], []>} : vector<64x128xf32>, vector<128x128xf32>, vector<64x128xf32> -> vector<64x128xf32>
    %c0_61 = arith.constant 0 : index
    %c128 = arith.constant 128 : index
    %59 = vector.load %arg3[%c0_61, %c128] : memref<1x256xf32, #tpu.memory_space<vmem>>, vector<1x128xf32>
    %60 = vector.broadcast %59 : vector<1x128xf32> to vector<64x128xf32>
    %61 = arith.addf %58, %60 : vector<64x128xf32>
    %c0_62 = arith.constant 0 : index
    %c0_63 = arith.constant 0 : index
    %62 = vector.load %arg7[%c0_62, %c0_63] : memref<64x128xf32, #tpu.memory_space<vmem>>, vector<64x128xf32>
    tpu.vector_store %arg7[%c0_62, %c0_63], %61 {strides = array<i32>} : memref<64x128xf32, #tpu.memory_space<vmem>>, vector<64x128xf32>,
    %cst_64 = arith.constant 0.000000e+00 : f32
    %63 = vector.broadcast %cst_64 : f32 to vector<8x128xf32>
    %c0_65 = arith.constant 0 : index
    %c0_66 = arith.constant 0 : index
    %64 = vector.load %arg7[%c0_65, %c0_66] : memref<64x128xf32, #tpu.memory_space<vmem>>, vector<8x128xf32>
    %c128_67 = arith.constant 128 : index
    %c0_68 = arith.constant 0 : index
    %65 = vector.load %arg2[%c128_67, %c0_68] : memref<256x128xf32, #tpu.memory_space<vmem>>, vector<128x128xf32>
    %cst_69 = arith.constant dense<0.000000e+00> : vector<8x128xf32>
    %66 = tpu.matmul %63, %65, %cst_69 {dimension_numbers = #tpu.dot_dimension_numbers<[1], [0], [0], [1], [0, 0, 1, 1], [], []>} : vector<8x128xf32>, vector<128x128xf32>, vector<8x128xf32> -> vector<8x128xf32>
    %67 = arith.addf %64, %66 : vector<8x128xf32>
    %68 = math.tanh %67 : vector<8x128xf32>
    %c0_70 = arith.constant 0 : index
    %c0_71 = arith.constant 0 : index
    %69 = vector.load %arg8[%c0_70, %c0_71] : memref<64x128xf32, #tpu.memory_space<vmem>>, vector<8x128xf32>
    tpu.vector_store %arg8[%c0_70, %c0_71], %68 {strides = array<i32>} : memref<64x128xf32, #tpu.memory_space<vmem>>, vector<8x128xf32>,
    %c8_72 = arith.constant 8 : index
    %c0_73 = arith.constant 0 : index
    %70 = vector.load %arg7[%c8_72, %c0_73] : memref<64x128xf32, #tpu.memory_space<vmem>>, vector<8x128xf32>
    %c128_74 = arith.constant 128 : index
    %c0_75 = arith.constant 0 : index
    %71 = vector.load %arg2[%c128_74, %c0_75] : memref<256x128xf32, #tpu.memory_space<vmem>>, vector<128x128xf32>
    %cst_76 = arith.constant dense<0.000000e+00> : vector<8x128xf32>
    %72 = tpu.matmul %68, %71, %cst_76 {dimension_numbers = #tpu.dot_dimension_numbers<[1], [0], [0], [1], [0, 0, 1, 1], [], []>} : vector<8x128xf32>, vector<128x128xf32>, vector<8x128xf32> -> vector<8x128xf32>
    %73 = arith.addf %70, %72 : vector<8x128xf32>
    %74 = math.tanh %73 : vector<8x128xf32>
    %c8_77 = arith.constant 8 : index
    %c0_78 = arith.constant 0 : index
    %75 = vector.load %arg8[%c8_77, %c0_78] : memref<64x128xf32, #tpu.memory_space<vmem>>, vector<8x128xf32>
    tpu.vector_store %arg8[%c8_77, %c0_78], %74 {strides = array<i32>} : memref<64x128xf32, #tpu.memory_space<vmem>>, vector<8x128xf32>,
    %c16_79 = arith.constant 16 : index
    %c0_80 = arith.constant 0 : index
    %76 = vector.load %arg7[%c16_79, %c0_80] : memref<64x128xf32, #tpu.memory_space<vmem>>, vector<8x128xf32>
    %c128_81 = arith.constant 128 : index
    %c0_82 = arith.constant 0 : index
    %77 = vector.load %arg2[%c128_81, %c0_82] : memref<256x128xf32, #tpu.memory_space<vmem>>, vector<128x128xf32>
    %cst_83 = arith.constant dense<0.000000e+00> : vector<8x128xf32>
    %78 = tpu.matmul %74, %77, %cst_83 {dimension_numbers = #tpu.dot_dimension_numbers<[1], [0], [0], [1], [0, 0, 1, 1], [], []>} : vector<8x128xf32>, vector<128x128xf32>, vector<8x128xf32> -> vector<8x128xf32>
    %79 = arith.addf %76, %78 : vector<8x128xf32>
    %80 = math.tanh %79 : vector<8x128xf32>
    %c16_84 = arith.constant 16 : index
    %c0_85 = arith.constant 0 : index
    %81 = vector.load %arg8[%c16_84, %c0_85] : memref<64x128xf32, #tpu.memory_space<vmem>>, vector<8x128xf32>
    tpu.vector_store %arg8[%c16_84, %c0_85], %80 {strides = array<i32>} : memref<64x128xf32, #tpu.memory_space<vmem>>, vector<8x128xf32>,
    %c24_86 = arith.constant 24 : index
    %c0_87 = arith.constant 0 : index
    %82 = vector.load %arg7[%c24_86, %c0_87] : memref<64x128xf32, #tpu.memory_space<vmem>>, vector<8x128xf32>
    %c128_88 = arith.constant 128 : index
    %c0_89 = arith.constant 0 : index
    %83 = vector.load %arg2[%c128_88, %c0_89] : memref<256x128xf32, #tpu.memory_space<vmem>>, vector<128x128xf32>
    %cst_90 = arith.constant dense<0.000000e+00> : vector<8x128xf32>
    %84 = tpu.matmul %80, %83, %cst_90 {dimension_numbers = #tpu.dot_dimension_numbers<[1], [0], [0], [1], [0, 0, 1, 1], [], []>} : vector<8x128xf32>, vector<128x128xf32>, vector<8x128xf32> -> vector<8x128xf32>
    %85 = arith.addf %82, %84 : vector<8x128xf32>
    %86 = math.tanh %85 : vector<8x128xf32>
    %c24_91 = arith.constant 24 : index
    %c0_92 = arith.constant 0 : index
    %87 = vector.load %arg8[%c24_91, %c0_92] : memref<64x128xf32, #tpu.memory_space<vmem>>, vector<8x128xf32>
    tpu.vector_store %arg8[%c24_91, %c0_92], %86 {strides = array<i32>} : memref<64x128xf32, #tpu.memory_space<vmem>>, vector<8x128xf32>,
    %c32_93 = arith.constant 32 : index
    %c0_94 = arith.constant 0 : index
    %88 = vector.load %arg7[%c32_93, %c0_94] : memref<64x128xf32, #tpu.memory_space<vmem>>, vector<8x128xf32>
    %c128_95 = arith.constant 128 : index
    %c0_96 = arith.constant 0 : index
    %89 = vector.load %arg2[%c128_95, %c0_96] : memref<256x128xf32, #tpu.memory_space<vmem>>, vector<128x128xf32>
    %cst_97 = arith.constant dense<0.000000e+00> : vector<8x128xf32>
    %90 = tpu.matmul %86, %89, %cst_97 {dimension_numbers = #tpu.dot_dimension_numbers<[1], [0], [0], [1], [0, 0, 1, 1], [], []>} : vector<8x128xf32>, vector<128x128xf32>, vector<8x128xf32> -> vector<8x128xf32>
    %91 = arith.addf %88, %90 : vector<8x128xf32>
    %92 = math.tanh %91 : vector<8x128xf32>
    %c32_98 = arith.constant 32 : index
    %c0_99 = arith.constant 0 : index
    %93 = vector.load %arg8[%c32_98, %c0_99] : memref<64x128xf32, #tpu.memory_space<vmem>>, vector<8x128xf32>
    tpu.vector_store %arg8[%c32_98, %c0_99], %92 {strides = array<i32>} : memref<64x128xf32, #tpu.memory_space<vmem>>, vector<8x128xf32>,
    %c40_100 = arith.constant 40 : index
    %c0_101 = arith.constant 0 : index
    %94 = vector.load %arg7[%c40_100, %c0_101] : memref<64x128xf32, #tpu.memory_space<vmem>>, vector<8x128xf32>
    %c128_102 = arith.constant 128 : index
    %c0_103 = arith.constant 0 : index
    %95 = vector.load %arg2[%c128_102, %c0_103] : memref<256x128xf32, #tpu.memory_space<vmem>>, vector<128x128xf32>
    %cst_104 = arith.constant dense<0.000000e+00> : vector<8x128xf32>
    %96 = tpu.matmul %92, %95, %cst_104 {dimension_numbers = #tpu.dot_dimension_numbers<[1], [0], [0], [1], [0, 0, 1, 1], [], []>} : vector<8x128xf32>, vector<128x128xf32>, vector<8x128xf32> -> vector<8x128xf32>
    %97 = arith.addf %94, %96 : vector<8x128xf32>
    %98 = math.tanh %97 : vector<8x128xf32>
    %c40_105 = arith.constant 40 : index
    %c0_106 = arith.constant 0 : index
    %99 = vector.load %arg8[%c40_105, %c0_106] : memref<64x128xf32, #tpu.memory_space<vmem>>, vector<8x128xf32>
    tpu.vector_store %arg8[%c40_105, %c0_106], %98 {strides = array<i32>} : memref<64x128xf32, #tpu.memory_space<vmem>>, vector<8x128xf32>,
    %c48_107 = arith.constant 48 : index
    %c0_108 = arith.constant 0 : index
    %100 = vector.load %arg7[%c48_107, %c0_108] : memref<64x128xf32, #tpu.memory_space<vmem>>, vector<8x128xf32>
    %c128_109 = arith.constant 128 : index
    %c0_110 = arith.constant 0 : index
    %101 = vector.load %arg2[%c128_109, %c0_110] : memref<256x128xf32, #tpu.memory_space<vmem>>, vector<128x128xf32>
    %cst_111 = arith.constant dense<0.000000e+00> : vector<8x128xf32>
    %102 = tpu.matmul %98, %101, %cst_111 {dimension_numbers = #tpu.dot_dimension_numbers<[1], [0], [0], [1], [0, 0, 1, 1], [], []>} : vector<8x128xf32>, vector<128x128xf32>, vector<8x128xf32> -> vector<8x128xf32>
    %103 = arith.addf %100, %102 : vector<8x128xf32>
    %104 = math.tanh %103 : vector<8x128xf32>
    %c48_112 = arith.constant 48 : index
    %c0_113 = arith.constant 0 : index
    %105 = vector.load %arg8[%c48_112, %c0_113] : memref<64x128xf32, #tpu.memory_space<vmem>>, vector<8x128xf32>
    tpu.vector_store %arg8[%c48_112, %c0_113], %104 {strides = array<i32>} : memref<64x128xf32, #tpu.memory_space<vmem>>, vector<8x128xf32>,
    %c56_114 = arith.constant 56 : index
    %c0_115 = arith.constant 0 : index
    %106 = vector.load %arg7[%c56_114, %c0_115] : memref<64x128xf32, #tpu.memory_space<vmem>>, vector<8x128xf32>
    %c128_116 = arith.constant 128 : index
    %c0_117 = arith.constant 0 : index
    %107 = vector.load %arg2[%c128_116, %c0_117] : memref<256x128xf32, #tpu.memory_space<vmem>>, vector<128x128xf32>
    %cst_118 = arith.constant dense<0.000000e+00> : vector<8x128xf32>
    %108 = tpu.matmul %104, %107, %cst_118 {dimension_numbers = #tpu.dot_dimension_numbers<[1], [0], [0], [1], [0, 0, 1, 1], [], []>} : vector<8x128xf32>, vector<128x128xf32>, vector<8x128xf32> -> vector<8x128xf32>
    %109 = arith.addf %106, %108 : vector<8x128xf32>
    %110 = math.tanh %109 : vector<8x128xf32>
    %c56_119 = arith.constant 56 : index
    %c0_120 = arith.constant 0 : index
    %111 = vector.load %arg8[%c56_119, %c0_120] : memref<64x128xf32, #tpu.memory_space<vmem>>, vector<8x128xf32>
    tpu.vector_store %arg8[%c56_119, %c0_120], %110 {strides = array<i32>} : memref<64x128xf32, #tpu.memory_space<vmem>>, vector<8x128xf32>,
    %c0_121 = arith.constant 0 : index
    %c0_122 = arith.constant 0 : index
    %112 = vector.load %arg8[%c0_121, %c0_122] : memref<64x128xf32, #tpu.memory_space<vmem>>, vector<64x128xf32>
    %c0_123 = arith.constant 0 : index
    %c0_124 = arith.constant 0 : index
    %113 = vector.load %arg4[%c0_123, %c0_124] : memref<128x128xf32, #tpu.memory_space<vmem>>, vector<128x128xf32>
    %cst_125 = arith.constant dense<0.000000e+00> : vector<64x128xf32>
    %114 = tpu.matmul %112, %113, %cst_125 {dimension_numbers = #tpu.dot_dimension_numbers<[1], [0], [0], [1], [0, 0, 1, 1], [], []>} : vector<64x128xf32>, vector<128x128xf32>, vector<64x128xf32> -> vector<64x128xf32>
    %c0_126 = arith.constant 0 : index
    %c0_127 = arith.constant 0 : index
    %115 = vector.load %arg5[%c0_126, %c0_127] : memref<1x128xf32, #tpu.memory_space<vmem>>, vector<1x128xf32>
    %116 = vector.broadcast %115 : vector<1x128xf32> to vector<64x128xf32>
    %117 = arith.addf %114, %116 : vector<64x128xf32>
    %c0_128 = arith.constant 0 : index
    %c0_129 = arith.constant 0 : index
    %118 = vector.load %arg6[%c0_128, %c0_129] : memref<64x128xf32, #tpu.memory_space<vmem>>, vector<64x128xf32>
    tpu.vector_store %arg6[%c0_128, %c0_129], %117 {strides = array<i32>} : memref<64x128xf32, #tpu.memory_space<vmem>>, vector<64x128xf32>,
    return
  }
}

</mosaic_0001>

<llo_original>
// kernel: rnn_model_forward.1
$region0: #{rnn_model_forward.1}
  #allocation0 [shape = 'u32[]', space=smem, size = 0x4, offset = 0x4, fixed_abs, tag = 'smem constant byte address 0x4 - core index']
  #allocation1 [shape = 'u32[72,128]{1,0:T(1,128)}', space=vmem, size = 0x9000, scoped, tag = 'internal scratch']
  #allocation2 [shape = 'f32[64,128]{1,0:T(8,128)}', space=vmem, size = 0x8000, scoped, tag = 'scratch operand']
  #allocation3 [shape = 'f32[64,128]{1,0:T(8,128)}', space=vmem, size = 0x8000, scoped, tag = 'scratch operand']
  %s0 = inlined_call_operand.vmem [shape: f32[64,512], index: 0, kind: input, shape index: {}]
  %s1 = inlined_call_operand.vmem [shape: f32[640,128], index: 1, kind: input, shape index: {}]
  %s2 = inlined_call_operand.hbm [shape: f32[256,128], index: 2, kind: input, shape index: {}]
  %s3 = inlined_call_operand.vmem [shape: f32[1,256], index: 3, kind: input, shape index: {}]
  %s4 = inlined_call_operand.vmem [shape: f32[128,128], index: 4, kind: input, shape index: {}]
  %s5 = inlined_call_operand.vmem [shape: f32[1,128], index: 5, kind: input, shape index: {}]
  %s6 = inlined_call_operand.vmem [shape: f32[64,128], index: 6, kind: output, shape index: {}]
  %s7 = sld [smem:[#allocation0]]
  $region38: #{rnn_model_forward.1} parent=0
    _
  %s9 = ssub.s32 1, %s7
  %s10 = scalar_select 0, %s9, %s7
  $region1: #{rnn_model_forward.1} parent=0
    #allocation4 [shape = 'u8[131072]{0}', space=vmem, size = 0x20000, scoped, tag = 'input window, operand 2, single buffered']
    #allocation5 [shape = 's32[1]{0}', space=sflag, size = 0x4, scoped, tag = 'scoped memory for rnn_model_forward.1']
    %11 = vsyncpa [#allocation5], 0
    // Predicated region
    $region2: #{rnn_model_forward.1} parent=1 // pred_check
      _
    $region3: #{rnn_model_forward.1} parent=1 // pred_check_branch
      %13 = sbr.rel (0) target = $region5
    $region4: #{rnn_model_forward.1} parent=1 // pred_region
      _
    $region5: #{rnn_model_forward.1} parent=1 // pred_fallthru
      _
    // Predicated region
    $region6: #{rnn_model_forward.1} parent=1 // pred_check
      _
    $region7: #{rnn_model_forward.1} parent=1 // pred_check_branch
      %15 = sbr.rel (0) target = $region9
    $region8: #{rnn_model_forward.1} parent=1 // pred_region
      _
    $region9: #{rnn_model_forward.1} parent=1 // pred_fallthru
      _
    // Predicated region
    $region10: #{rnn_model_forward.1} parent=1 // pred_check
      _
    $region11: #{rnn_model_forward.1} parent=1 // pred_check_branch
      %17 = sbr.rel (0) target = $region13
    $region12: #{rnn_model_forward.1} parent=1 // pred_region
      %19 = vsyncadd [#allocation5], 0
      %s20 = sshll.u32 %s2, 4
      %s21 = int_to_ptr.hbm [resolvable:$true] %s20
      %s22 = sshll.u32 [#allocation4], 4
      %s23 = int_to_ptr.vmem [resolvable:$true] %s22
      %28 = dma.hbm_to_vmem [thread:$0]  %s21, 4096, %s23, [#allocation5], 128, 128, 8
    $region13: #{rnn_model_forward.1} parent=1 // pred_fallthru
      _
    // Predicated region
    $region14: #{rnn_model_forward.1} parent=1 // pred_check
      _
    $region15: #{rnn_model_forward.1} parent=1 // pred_check_branch
      %30 = sbr.rel (0) target = $region17
    $region16: #{rnn_model_forward.1} parent=1 // pred_region
      _
    $region17: #{rnn_model_forward.1} parent=1 // pred_fallthru
      _
    // Predicated region
    $region18: #{rnn_model_forward.1} parent=1 // pred_check
      _
    $region19: #{rnn_model_forward.1} parent=1 // pred_check_branch
      %32 = sbr.rel (0) target = $region21
    $region20: #{rnn_model_forward.1} parent=1 // pred_region
      _
    $region21: #{rnn_model_forward.1} parent=1 // pred_fallthru
      _
    // Predicated region
    $region22: #{rnn_model_forward.1} parent=1 // pred_check
      _
    $region23: #{rnn_model_forward.1} parent=1 // pred_check_branch
      %34 = sbr.rel (0) target = $region25
    $region24: #{rnn_model_forward.1} parent=1 // pred_region
      _
    $region25: #{rnn_model_forward.1} parent=1 // pred_fallthru
      _
    // Predicated region
    $region26: #{rnn_model_forward.1} parent=1 // pred_check
      _
    $region27: #{rnn_model_forward.1} parent=1 // pred_check_branch
      %36 = sbr.rel (0) target = $region29
    $region28: #{rnn_model_forward.1} parent=1 // pred_region
      %38 = dma.done [#allocation5], 4096
    $region29: #{rnn_model_forward.1} parent=1 // pred_fallthru
      _
    %v39 = vld [vmem:[%s0] sm:$0xff]
    %v40 = vld [vmem:[%s0 + $0x8] sm:$0xff]
    %v41 = vld [vmem:[%s0 + $0x10] sm:$0xff]
    %v42 = vld [vmem:[%s0 + $0x18] sm:$0xff]
    %v43 = vld [vmem:[%s0 + $0x20] sm:$0xff]
    %v44 = vld [vmem:[%s0 + $0x28] sm:$0xff]
    %v45 = vld [vmem:[%s0 + $0x30] sm:$0xff]
    %v46 = vld [vmem:[%s0 + $0x38] sm:$0xff]
    %v47 = vld [vmem:[%s0 + $0x40] sm:$0xff]
    %v48 = vld [vmem:[%s0 + $0x48] sm:$0xff]
    %v49 = vld [vmem:[%s0 + $0x50] sm:$0xff]
    %v50 = vld [vmem:[%s0 + $0x58] sm:$0xff]
    %v51 = vld [vmem:[%s0 + $0x60] sm:$0xff]
    %v52 = vld [vmem:[%s0 + $0x68] sm:$0xff]
    %v53 = vld [vmem:[%s0 + $0x70] sm:$0xff]
    %v54 = vld [vmem:[%s0 + $0x78] sm:$0xff]
    %v55 = vld [vmem:[%s0 + $0x80] sm:$0xff]
    %v56 = vld [vmem:[%s0 + $0x88] sm:$0xff]
    %v57 = vld [vmem:[%s0 + $0x90] sm:$0xff]
    %v58 = vld [vmem:[%s0 + $0x98] sm:$0xff]
    %v59 = vld [vmem:[%s0 + $0xa0] sm:$0xff]
    %v60 = vld [vmem:[%s0 + $0xa8] sm:$0xff]
    %v61 = vld [vmem:[%s0 + $0xb0] sm:$0xff]
    %v62 = vld [vmem:[%s0 + $0xb8] sm:$0xff]
    %v63 = vld [vmem:[%s0 + $0xc0] sm:$0xff]
    %v64 = vld [vmem:[%s0 + $0xc8] sm:$0xff]
    %v65 = vld [vmem:[%s0 + $0xd0] sm:$0xff]
    %v66 = vld [vmem:[%s0 + $0xd8] sm:$0xff]
    %v67 = vld [vmem:[%s0 + $0xe0] sm:$0xff]
    %v68 = vld [vmem:[%s0 + $0xe8] sm:$0xff]
    %v69 = vld [vmem:[%s0 + $0xf0] sm:$0xff]
    %v70 = vld [vmem:[%s0 + $0xf8] sm:$0xff]
    %v71 = vld [vmem:[%s1] sm:$0xff]
    %v72 = vld [vmem:[%s1 + $0x8] sm:$0xff]
    %v73 = vld [vmem:[%s1 + $0x10] sm:$0xff]
    %v74 = vld [vmem:[%s1 + $0x18] sm:$0xff]
    %v75 = vld [vmem:[%s1 + $0x20] sm:$0xff]
    %v76 = vld [vmem:[%s1 + $0x28] sm:$0xff]
    %v77 = vld [vmem:[%s1 + $0x30] sm:$0xff]
    %v78 = vld [vmem:[%s1 + $0x38] sm:$0xff]
    %v79 = vld [vmem:[%s1 + $0x40] sm:$0xff]
    %v80 = vld [vmem:[%s1 + $0x48] sm:$0xff]
    %v81 = vld [vmem:[%s1 + $0x50] sm:$0xff]
    %v82 = vld [vmem:[%s1 + $0x58] sm:$0xff]
    %v83 = vld [vmem:[%s1 + $0x60] sm:$0xff]
    %v84 = vld [vmem:[%s1 + $0x68] sm:$0xff]
    %v85 = vld [vmem:[%s1 + $0x70] sm:$0xff]
    %v86 = vld [vmem:[%s1 + $0x78] sm:$0xff]
    %v87 = vld [vmem:[%s1 + $0x80] sm:$0xff]
    %v88 = vld [vmem:[%s1 + $0x88] sm:$0xff]
    %v89 = vld [vmem:[%s1 + $0x90] sm:$0xff]
    %v90 = vld [vmem:[%s1 + $0x98] sm:$0xff]
    %v91 = vld [vmem:[%s1 + $0xa0] sm:$0xff]
    %v92 = vld [vmem:[%s1 + $0xa8] sm:$0xff]
    %v93 = vld [vmem:[%s1 + $0xb0] sm:$0xff]
    %v94 = vld [vmem:[%s1 + $0xb8] sm:$0xff]
    %v95 = vld [vmem:[%s1 + $0xc0] sm:$0xff]
    %v96 = vld [vmem:[%s1 + $0xc8] sm:$0xff]
    %v97 = vld [vmem:[%s1 + $0xd0] sm:$0xff]
    %v98 = vld [vmem:[%s1 + $0xd8] sm:$0xff]
    %v99 = vld [vmem:[%s1 + $0xe0] sm:$0xff]
    %v100 = vld [vmem:[%s1 + $0xe8] sm:$0xff]
    %v101 = vld [vmem:[%s1 + $0xf0] sm:$0xff]
    %v102 = vld [vmem:[%s1 + $0xf8] sm:$0xff]
    %v103 = vld [vmem:[%s1 + $0x100] sm:$0xff]
    %v104 = vld [vmem:[%s1 + $0x108] sm:$0xff]
    %v105 = vld [vmem:[%s1 + $0x110] sm:$0xff]
    %v106 = vld [vmem:[%s1 + $0x118] sm:$0xff]
    %v107 = vld [vmem:[%s1 + $0x120] sm:$0xff]
    %v108 = vld [vmem:[%s1 + $0x128] sm:$0xff]
    %v109 = vld [vmem:[%s1 + $0x130] sm:$0xff]
    %v110 = vld [vmem:[%s1 + $0x138] sm:$0xff]
    %v111 = vld [vmem:[%s1 + $0x140] sm:$0xff]
    %v112 = vld [vmem:[%s1 + $0x148] sm:$0xff]
    %v113 = vld [vmem:[%s1 + $0x150] sm:$0xff]
    %v114 = vld [vmem:[%s1 + $0x158] sm:$0xff]
    %v115 = vld [vmem:[%s1 + $0x160] sm:$0xff]
    %v116 = vld [vmem:[%s1 + $0x168] sm:$0xff]
    %v117 = vld [vmem:[%s1 + $0x170] sm:$0xff]
    %v118 = vld [vmem:[%s1 + $0x178] sm:$0xff]
    %v119 = vld [vmem:[%s1 + $0x180] sm:$0xff]
    %v120 = vld [vmem:[%s1 + $0x188] sm:$0xff]
    %v121 = vld [vmem:[%s1 + $0x190] sm:$0xff]
    %v122 = vld [vmem:[%s1 + $0x198] sm:$0xff]
    %v123 = vld [vmem:[%s1 + $0x1a0] sm:$0xff]
    %v124 = vld [vmem:[%s1 + $0x1a8] sm:$0xff]
    %v125 = vld [vmem:[%s1 + $0x1b0] sm:$0xff]
    %v126 = vld [vmem:[%s1 + $0x1b8] sm:$0xff]
    %v127 = vld [vmem:[%s1 + $0x1c0] sm:$0xff]
    %v128 = vld [vmem:[%s1 + $0x1c8] sm:$0xff]
    %v129 = vld [vmem:[%s1 + $0x1d0] sm:$0xff]
    %v130 = vld [vmem:[%s1 + $0x1d8] sm:$0xff]
    %v131 = vld [vmem:[%s1 + $0x1e0] sm:$0xff]
    %v132 = vld [vmem:[%s1 + $0x1e8] sm:$0xff]
    %v133 = vld [vmem:[%s1 + $0x1f0] sm:$0xff]
    %v134 = vld [vmem:[%s1 + $0x1f8] sm:$0xff]
    %v135 = vld [vmem:[%s3] sm:$0x1]
    %v137 = vperm.slane %v135, 0
    %139 = vmatpush.msra.mxu0 %v86
    %140 = vmatpush.msra.mxu0 %v85
    %141 = vmatpush.msra.mxu0 %v84
    %142 = vmatpush.msra.mxu0 %v83
    %143 = vmatpush.msra.mxu0 %v82
    %144 = vmatpush.msra.mxu0 %v81
    %145 = vmatpush.msra.mxu0 %v80
    %146 = vmatpush.msra.mxu0 %v79
    %147 = vmatpush.msra.mxu0 %v78
    %148 = vmatpush.msra.mxu0 %v77
    %149 = vmatpush.msra.mxu0 %v76
    %150 = vmatpush.msra.mxu0 %v75
    %151 = vmatpush.msra.mxu0 %v74
    %152 = vmatpush.msra.mxu0 %v73
    %153 = vmatpush.msra.mxu0 %v72
    %154 = vmatpush.msra.mxu0 %v71
    %155 = vmatmul.f32.gmra.mxu0 %v39
    %v156 = vpop.f32.mrf.mxu0
    %v157 = vadd.f32 %v137, %v156
    %158 = vmatmul.f32.gmra.mxu0 %v43
    %v159 = vpop.f32.mrf.mxu0
    %v160 = vadd.f32 %v137, %v159
    %161 = vmatmul.f32.gmra.mxu0 %v47
    %v162 = vpop.f32.mrf.mxu0
    %v163 = vadd.f32 %v137, %v162
    %164 = vmatmul.f32.gmra.mxu0 %v51
    %v165 = vpop.f32.mrf.mxu0
    %v166 = vadd.f32 %v137, %v165
    %167 = vmatmul.f32.gmra.mxu0 %v55
    %v168 = vpop.f32.mrf.mxu0
    %v169 = vadd.f32 %v137, %v168
    %170 = vmatmul.f32.gmra.mxu0 %v59
    %v171 = vpop.f32.mrf.mxu0
    %v172 = vadd.f32 %v137, %v171
    %173 = vmatmul.f32.gmra.mxu0 %v63
    %v174 = vpop.f32.mrf.mxu0
    %v175 = vadd.f32 %v137, %v174
    %176 = vmatmul.f32.gmra.mxu0 %v67
    %v177 = vpop.f32.mrf.mxu0
    %v178 = vadd.f32 %v137, %v177
    %179 = vdwg.mxu0
    %180 = vmatpush.msra.mxu0 %v102
    %181 = vmatpush.msra.mxu0 %v101
    %182 = vmatpush.msra.mxu0 %v100
    %183 = vmatpush.msra.mxu0 %v99
    %184 = vmatpush.msra.mxu0 %v98
    %185 = vmatpush.msra.mxu0 %v97
    %186 = vmatpush.msra.mxu0 %v96
    %187 = vmatpush.msra.mxu0 %v95
    %188 = vmatpush.msra.mxu0 %v94
    %189 = vmatpush.msra.mxu0 %v93
    %190 = vmatpush.msra.mxu0 %v92
    %191 = vmatpush.msra.mxu0 %v91
    %192 = vmatpush.msra.mxu0 %v90
    %193 = vmatpush.msra.mxu0 %v89
    %194 = vmatpush.msra.mxu0 %v88
    %195 = vmatpush.msra.mxu0 %v87
    %196 = vmatmul.f32.gmra.mxu0 %v40
    %v197 = vpop.f32.mrf.mxu0
    %v198 = vadd.f32 %v157, %v197
    %199 = vmatmul.f32.gmra.mxu0 %v44
    %v200 = vpop.f32.mrf.mxu0
    %v201 = vadd.f32 %v160, %v200
    %202 = vmatmul.f32.gmra.mxu0 %v48
    %v203 = vpop.f32.mrf.mxu0
    %v204 = vadd.f32 %v163, %v203
    %205 = vmatmul.f32.gmra.mxu0 %v52
    %v206 = vpop.f32.mrf.mxu0
    %v207 = vadd.f32 %v166, %v206
    %208 = vmatmul.f32.gmra.mxu0 %v56
    %v209 = vpop.f32.mrf.mxu0
    %v210 = vadd.f32 %v169, %v209
    %211 = vmatmul.f32.gmra.mxu0 %v60
    %v212 = vpop.f32.mrf.mxu0
    %v213 = vadd.f32 %v172, %v212
    %214 = vmatmul.f32.gmra.mxu0 %v64
    %v215 = vpop.f32.mrf.mxu0
    %v216 = vadd.f32 %v175, %v215
    %217 = vmatmul.f32.gmra.mxu0 %v68
    %v218 = vpop.f32.mrf.mxu0
    %v219 = vadd.f32 %v178, %v218
    %220 = vdwg.mxu0
    %221 = vmatpush.msra.mxu0 %v118
    %222 = vmatpush.msra.mxu0 %v117
    %223 = vmatpush.msra.mxu0 %v116
    %224 = vmatpush.msra.mxu0 %v115
    %225 = vmatpush.msra.mxu0 %v114
    %226 = vmatpush.msra.mxu0 %v113
    %227 = vmatpush.msra.mxu0 %v112
    %228 = vmatpush.msra.mxu0 %v111
    %229 = vmatpush.msra.mxu0 %v110
    %230 = vmatpush.msra.mxu0 %v109
    %231 = vmatpush.msra.mxu0 %v108
    %232 = vmatpush.msra.mxu0 %v107
    %233 = vmatpush.msra.mxu0 %v106
    %234 = vmatpush.msra.mxu0 %v105
    %235 = vmatpush.msra.mxu0 %v104
    %236 = vmatpush.msra.mxu0 %v103
    %237 = vmatmul.f32.gmra.mxu0 %v41
    %v238 = vpop.f32.mrf.mxu0
    %v239 = vadd.f32 %v198, %v238
    %240 = vmatmul.f32.gmra.mxu0 %v45
    %v241 = vpop.f32.mrf.mxu0
    %v242 = vadd.f32 %v201, %v241
    %243 = vmatmul.f32.gmra.mxu0 %v49
    %v244 = vpop.f32.mrf.mxu0
    %v245 = vadd.f32 %v204, %v244
    %246 = vmatmul.f32.gmra.mxu0 %v53
    %v247 = vpop.f32.mrf.mxu0
    %v248 = vadd.f32 %v207, %v247
    %249 = vmatmul.f32.gmra.mxu0 %v57
    %v250 = vpop.f32.mrf.mxu0
    %v251 = vadd.f32 %v210, %v250
    %252 = vmatmul.f32.gmra.mxu0 %v61
    %v253 = vpop.f32.mrf.mxu0
    %v254 = vadd.f32 %v213, %v253
    %255 = vmatmul.f32.gmra.mxu0 %v65
    %v256 = vpop.f32.mrf.mxu0
    %v257 = vadd.f32 %v216, %v256
    %258 = vmatmul.f32.gmra.mxu0 %v69
    %v259 = vpop.f32.mrf.mxu0
    %v260 = vadd.f32 %v219, %v259
    %261 = vdwg.mxu0
    %262 = vmatpush.msra.mxu0 %v134
    %263 = vmatpush.msra.mxu0 %v133
    %264 = vmatpush.msra.mxu0 %v132
    %265 = vmatpush.msra.mxu0 %v131
    %266 = vmatpush.msra.mxu0 %v130
    %267 = vmatpush.msra.mxu0 %v129
    %268 = vmatpush.msra.mxu0 %v128
    %269 = vmatpush.msra.mxu0 %v127
    %270 = vmatpush.msra.mxu0 %v126
    %271 = vmatpush.msra.mxu0 %v125
    %272 = vmatpush.msra.mxu0 %v124
    %273 = vmatpush.msra.mxu0 %v123
    %274 = vmatpush.msra.mxu0 %v122
    %275 = vmatpush.msra.mxu0 %v121
    %276 = vmatpush.msra.mxu0 %v120
    %277 = vmatpush.msra.mxu0 %v119
    %278 = vmatmul.f32.gmra.mxu0 %v42
    %v279 = vpop.f32.mrf.mxu0
    %v280 = vadd.f32 %v239, %v279
    %281 = vmatmul.f32.gmra.mxu0 %v46
    %v282 = vpop.f32.mrf.mxu0
    %v283 = vadd.f32 %v242, %v282
    %284 = vmatmul.f32.gmra.mxu0 %v50
    %v285 = vpop.f32.mrf.mxu0
    %v286 = vadd.f32 %v245, %v285
    %287 = vmatmul.f32.gmra.mxu0 %v54
    %v288 = vpop.f32.mrf.mxu0
    %v289 = vadd.f32 %v248, %v288
    %290 = vmatmul.f32.gmra.mxu0 %v58
    %v291 = vpop.f32.mrf.mxu0
    %v292 = vadd.f32 %v251, %v291
    %293 = vmatmul.f32.gmra.mxu0 %v62
    %v294 = vpop.f32.mrf.mxu0
    %v295 = vadd.f32 %v254, %v294
    %296 = vmatmul.f32.gmra.mxu0 %v66
    %v297 = vpop.f32.mrf.mxu0
    %v298 = vadd.f32 %v257, %v297
    %299 = vmatmul.f32.gmra.mxu0 %v70
    %v300 = vpop.f32.mrf.mxu0
    %v301 = vadd.f32 %v260, %v300
    %302 = vdwg.mxu0
    %303 = vst [vmem:[#allocation2] sm:$0xff] %v280
    %304 = vst [vmem:[#allocation2 + $0x8] sm:$0xff] %v283
    %305 = vst [vmem:[#allocation2 + $0x10] sm:$0xff] %v286
    %306 = vst [vmem:[#allocation2 + $0x18] sm:$0xff] %v289
    %307 = vst [vmem:[#allocation2 + $0x20] sm:$0xff] %v292
    %308 = vst [vmem:[#allocation2 + $0x28] sm:$0xff] %v295
    %309 = vst [vmem:[#allocation2 + $0x30] sm:$0xff] %v298
    %310 = vst [vmem:[#allocation2 + $0x38] sm:$0xff] %v301
    %v311 = vld [vmem:[#allocation2] sm:$0xff]
    %v312 = vld [vmem:[#allocation4] sm:$0xff]
    %v313 = vld [vmem:[#allocation4 + $0x8] sm:$0xff]
    %v314 = vld [vmem:[#allocation4 + $0x10] sm:$0xff]
    %v315 = vld [vmem:[#allocation4 + $0x18] sm:$0xff]
    %v316 = vld [vmem:[#allocation4 + $0x20] sm:$0xff]
    %v317 = vld [vmem:[#allocation4 + $0x28] sm:$0xff]
    %v318 = vld [vmem:[#allocation4 + $0x30] sm:$0xff]
    %v319 = vld [vmem:[#allocation4 + $0x38] sm:$0xff]
    %v320 = vld [vmem:[#allocation4 + $0x40] sm:$0xff]
    %v321 = vld [vmem:[#allocation4 + $0x48] sm:$0xff]
    %v322 = vld [vmem:[#allocation4 + $0x50] sm:$0xff]
    %v323 = vld [vmem:[#allocation4 + $0x58] sm:$0xff]
    %v324 = vld [vmem:[#allocation4 + $0x60] sm:$0xff]
    %v325 = vld [vmem:[#allocation4 + $0x68] sm:$0xff]
    %v326 = vld [vmem:[#allocation4 + $0x70] sm:$0xff]
    %v327 = vld [vmem:[#allocation4 + $0x78] sm:$0xff]
    %328 = vmatpush.msra.mxu0 %v327
    %329 = vmatpush.msra.mxu0 %v326
    %330 = vmatpush.msra.mxu0 %v325
    %331 = vmatpush.msra.mxu0 %v324
    %332 = vmatpush.msra.mxu0 %v323
    %333 = vmatpush.msra.mxu0 %v322
    %334 = vmatpush.msra.mxu0 %v321
    %335 = vmatpush.msra.mxu0 %v320
    %336 = vmatpush.msra.mxu0 %v319
    %337 = vmatpush.msra.mxu0 %v318
    %338 = vmatpush.msra.mxu0 %v317
    %339 = vmatpush.msra.mxu0 %v316
    %340 = vmatpush.msra.mxu0 %v315
    %341 = vmatpush.msra.mxu0 %v314
    %342 = vmatpush.msra.mxu0 %v313
    %343 = vmatpush.msra.mxu0 %v312
    %344 = vmatmul.f32.gmra.mxu0 0.0
    %v345 = vpop.f32.mrf.mxu0
    %v346 = vadd.f32 0.0, %v345
    %347 = vdwg.mxu0
    %v348 = vadd.f32 %v311, %v346
    %v349 = vtanh.pop %v348
    %350 = vst [vmem:[#allocation3] sm:$0xff] %v349
    %v351 = vld [vmem:[#allocation2 + $0x8] sm:$0xff]
    %v352 = vld [vmem:[#allocation4] sm:$0xff]
    %v353 = vld [vmem:[#allocation4 + $0x8] sm:$0xff]
    %v354 = vld [vmem:[#allocation4 + $0x10] sm:$0xff]
    %v355 = vld [vmem:[#allocation4 + $0x18] sm:$0xff]
    %v356 = vld [vmem:[#allocation4 + $0x20] sm:$0xff]
    %v357 = vld [vmem:[#allocation4 + $0x28] sm:$0xff]
    %v358 = vld [vmem:[#allocation4 + $0x30] sm:$0xff]
    %v359 = vld [vmem:[#allocation4 + $0x38] sm:$0xff]
    %v360 = vld [vmem:[#allocation4 + $0x40] sm:$0xff]
    %v361 = vld [vmem:[#allocation4 + $0x48] sm:$0xff]
    %v362 = vld [vmem:[#allocation4 + $0x50] sm:$0xff]
    %v363 = vld [vmem:[#allocation4 + $0x58] sm:$0xff]
    %v364 = vld [vmem:[#allocation4 + $0x60] sm:$0xff]
    %v365 = vld [vmem:[#allocation4 + $0x68] sm:$0xff]
    %v366 = vld [vmem:[#allocation4 + $0x70] sm:$0xff]
    %v367 = vld [vmem:[#allocation4 + $0x78] sm:$0xff]
    %368 = vmatpush.msra.mxu0 %v367
    %369 = vmatpush.msra.mxu0 %v366
    %370 = vmatpush.msra.mxu0 %v365
    %371 = vmatpush.msra.mxu0 %v364
    %372 = vmatpush.msra.mxu0 %v363
    %373 = vmatpush.msra.mxu0 %v362
    %374 = vmatpush.msra.mxu0 %v361
    %375 = vmatpush.msra.mxu0 %v360
    %376 = vmatpush.msra.mxu0 %v359
    %377 = vmatpush.msra.mxu0 %v358
    %378 = vmatpush.msra.mxu0 %v357
    %379 = vmatpush.msra.mxu0 %v356
    %380 = vmatpush.msra.mxu0 %v355
    %381 = vmatpush.msra.mxu0 %v354
    %382 = vmatpush.msra.mxu0 %v353
    %383 = vmatpush.msra.mxu0 %v352
    %384 = vmatmul.f32.gmra.mxu0 %v349
    %v385 = vpop.f32.mrf.mxu0
    %v386 = vadd.f32 0.0, %v385
    %387 = vdwg.mxu0
    %v388 = vadd.f32 %v351, %v386
    %v389 = vtanh.pop %v388
    %390 = vst [vmem:[#allocation3 + $0x8] sm:$0xff] %v389
    %v391 = vld [vmem:[#allocation2 + $0x10] sm:$0xff]
    %v392 = vld [vmem:[#allocation4] sm:$0xff]
    %v393 = vld [vmem:[#allocation4 + $0x8] sm:$0xff]
    %v394 = vld [vmem:[#allocation4 + $0x10] sm:$0xff]
    %v395 = vld [vmem:[#allocation4 + $0x18] sm:$0xff]
    %v396 = vld [vmem:[#allocation4 + $0x20] sm:$0xff]
    %v397 = vld [vmem:[#allocation4 + $0x28] sm:$0xff]
    %v398 = vld [vmem:[#allocation4 + $0x30] sm:$0xff]
    %v399 = vld [vmem:[#allocation4 + $0x38] sm:$0xff]
    %v400 = vld [vmem:[#allocation4 + $0x40] sm:$0xff]
    %v401 = vld [vmem:[#allocation4 + $0x48] sm:$0xff]
    %v402 = vld [vmem:[#allocation4 + $0x50] sm:$0xff]
    %v403 = vld [vmem:[#allocation4 + $0x58] sm:$0xff]
    %v404 = vld [vmem:[#allocation4 + $0x60] sm:$0xff]
    %v405 = vld [vmem:[#allocation4 + $0x68] sm:$0xff]
    %v406 = vld [vmem:[#allocation4 + $0x70] sm:$0xff]
    %v407 = vld [vmem:[#allocation4 + $0x78] sm:$0xff]
    %408 = vmatpush.msra.mxu0 %v407
    %409 = vmatpush.msra.mxu0 %v406
    %410 = vmatpush.msra.mxu0 %v405
    %411 = vmatpush.msra.mxu0 %v404
    %412 = vmatpush.msra.mxu0 %v403
    %413 = vmatpush.msra.mxu0 %v402
    %414 = vmatpush.msra.mxu0 %v401
    %415 = vmatpush.msra.mxu0 %v400
    %416 = vmatpush.msra.mxu0 %v399
    %417 = vmatpush.msra.mxu0 %v398
    %418 = vmatpush.msra.mxu0 %v397
    %419 = vmatpush.msra.mxu0 %v396
    %420 = vmatpush.msra.mxu0 %v395
    %421 = vmatpush.msra.mxu0 %v394
    %422 = vmatpush.msra.mxu0 %v393
    %423 = vmatpush.msra.mxu0 %v392
    %424 = vmatmul.f32.gmra.mxu0 %v389
    %v425 = vpop.f32.mrf.mxu0
    %v426 = vadd.f32 0.0, %v425
    %427 = vdwg.mxu0
    %v428 = vadd.f32 %v391, %v426
    %v429 = vtanh.pop %v428
    %430 = vst [vmem:[#allocation3 + $0x10] sm:$0xff] %v429
    %v431 = vld [vmem:[#allocation2 + $0x18] sm:$0xff]
    %v432 = vld [vmem:[#allocation4] sm:$0xff]
    %v433 = vld [vmem:[#allocation4 + $0x8] sm:$0xff]
    %v434 = vld [vmem:[#allocation4 + $0x10] sm:$0xff]
    %v435 = vld [vmem:[#allocation4 + $0x18] sm:$0xff]
    %v436 = vld [vmem:[#allocation4 + $0x20] sm:$0xff]
    %v437 = vld [vmem:[#allocation4 + $0x28] sm:$0xff]
    %v438 = vld [vmem:[#allocation4 + $0x30] sm:$0xff]
    %v439 = vld [vmem:[#allocation4 + $0x38] sm:$0xff]
    %v440 = vld [vmem:[#allocation4 + $0x40] sm:$0xff]
    %v441 = vld [vmem:[#allocation4 + $0x48] sm:$0xff]
    %v442 = vld [vmem:[#allocation4 + $0x50] sm:$0xff]
    %v443 = vld [vmem:[#allocation4 + $0x58] sm:$0xff]
    %v444 = vld [vmem:[#allocation4 + $0x60] sm:$0xff]
    %v445 = vld [vmem:[#allocation4 + $0x68] sm:$0xff]
    %v446 = vld [vmem:[#allocation4 + $0x70] sm:$0xff]
    %v447 = vld [vmem:[#allocation4 + $0x78] sm:$0xff]
    %448 = vmatpush.msra.mxu0 %v447
    %449 = vmatpush.msra.mxu0 %v446
    %450 = vmatpush.msra.mxu0 %v445
    %451 = vmatpush.msra.mxu0 %v444
    %452 = vmatpush.msra.mxu0 %v443
    %453 = vmatpush.msra.mxu0 %v442
    %454 = vmatpush.msra.mxu0 %v441
    %455 = vmatpush.msra.mxu0 %v440
    %456 = vmatpush.msra.mxu0 %v439
    %457 = vmatpush.msra.mxu0 %v438
    %458 = vmatpush.msra.mxu0 %v437
    %459 = vmatpush.msra.mxu0 %v436
    %460 = vmatpush.msra.mxu0 %v435
    %461 = vmatpush.msra.mxu0 %v434
    %462 = vmatpush.msra.mxu0 %v433
    %463 = vmatpush.msra.mxu0 %v432
    %464 = vmatmul.f32.gmra.mxu0 %v429
    %v465 = vpop.f32.mrf.mxu0
    %v466 = vadd.f32 0.0, %v465
    %467 = vdwg.mxu0
    %v468 = vadd.f32 %v431, %v466
    %v469 = vtanh.pop %v468
    %470 = vst [vmem:[#allocation3 + $0x18] sm:$0xff] %v469
    %v471 = vld [vmem:[#allocation2 + $0x20] sm:$0xff]
    %v472 = vld [vmem:[#allocation4] sm:$0xff]
    %v473 = vld [vmem:[#allocation4 + $0x8] sm:$0xff]
    %v474 = vld [vmem:[#allocation4 + $0x10] sm:$0xff]
    %v475 = vld [vmem:[#allocation4 + $0x18] sm:$0xff]
    %v476 = vld [vmem:[#allocation4 + $0x20] sm:$0xff]
    %v477 = vld [vmem:[#allocation4 + $0x28] sm:$0xff]
    %v478 = vld [vmem:[#allocation4 + $0x30] sm:$0xff]
    %v479 = vld [vmem:[#allocation4 + $0x38] sm:$0xff]
    %v480 = vld [vmem:[#allocation4 + $0x40] sm:$0xff]
    %v481 = vld [vmem:[#allocation4 + $0x48] sm:$0xff]
    %v482 = vld [vmem:[#allocation4 + $0x50] sm:$0xff]
    %v483 = vld [vmem:[#allocation4 + $0x58] sm:$0xff]
    %v484 = vld [vmem:[#allocation4 + $0x60] sm:$0xff]
    %v485 = vld [vmem:[#allocation4 + $0x68] sm:$0xff]
    %v486 = vld [vmem:[#allocation4 + $0x70] sm:$0xff]
    %v487 = vld [vmem:[#allocation4 + $0x78] sm:$0xff]
    %488 = vmatpush.msra.mxu0 %v487
    %489 = vmatpush.msra.mxu0 %v486
    %490 = vmatpush.msra.mxu0 %v485
    %491 = vmatpush.msra.mxu0 %v484
    %492 = vmatpush.msra.mxu0 %v483
    %493 = vmatpush.msra.mxu0 %v482
    %494 = vmatpush.msra.mxu0 %v481
    %495 = vmatpush.msra.mxu0 %v480
    %496 = vmatpush.msra.mxu0 %v479
    %497 = vmatpush.msra.mxu0 %v478
    %498 = vmatpush.msra.mxu0 %v477
    %499 = vmatpush.msra.mxu0 %v476
    %500 = vmatpush.msra.mxu0 %v475
    %501 = vmatpush.msra.mxu0 %v474
    %502 = vmatpush.msra.mxu0 %v473
    %503 = vmatpush.msra.mxu0 %v472
    %504 = vmatmul.f32.gmra.mxu0 %v469
    %v505 = vpop.f32.mrf.mxu0
    %v506 = vadd.f32 0.0, %v505
    %507 = vdwg.mxu0
    %v508 = vadd.f32 %v471, %v506
    %v509 = vtanh.pop %v508
    %510 = vst [vmem:[#allocation3 + $0x20] sm:$0xff] %v509
    %v511 = vld [vmem:[#allocation2 + $0x28] sm:$0xff]
    %v512 = vld [vmem:[#allocation4] sm:$0xff]
    %v513 = vld [vmem:[#allocation4 + $0x8] sm:$0xff]
    %v514 = vld [vmem:[#allocation4 + $0x10] sm:$0xff]
    %v515 = vld [vmem:[#allocation4 + $0x18] sm:$0xff]
    %v516 = vld [vmem:[#allocation4 + $0x20] sm:$0xff]
    %v517 = vld [vmem:[#allocation4 + $0x28] sm:$0xff]
    %v518 = vld [vmem:[#allocation4 + $0x30] sm:$0xff]
    %v519 = vld [vmem:[#allocation4 + $0x38] sm:$0xff]
    %v520 = vld [vmem:[#allocation4 + $0x40] sm:$0xff]
    %v521 = vld [vmem:[#allocation4 + $0x48] sm:$0xff]
    %v522 = vld [vmem:[#allocation4 + $0x50] sm:$0xff]
    %v523 = vld [vmem:[#allocation4 + $0x58] sm:$0xff]
    %v524 = vld [vmem:[#allocation4 + $0x60] sm:$0xff]
    %v525 = vld [vmem:[#allocation4 + $0x68] sm:$0xff]
    %v526 = vld [vmem:[#allocation4 + $0x70] sm:$0xff]
    %v527 = vld [vmem:[#allocation4 + $0x78] sm:$0xff]
    %528 = vmatpush.msra.mxu0 %v527
    %529 = vmatpush.msra.mxu0 %v526
    %530 = vmatpush.msra.mxu0 %v525
    %531 = vmatpush.msra.mxu0 %v524
    %532 = vmatpush.msra.mxu0 %v523
    %533 = vmatpush.msra.mxu0 %v522
    %534 = vmatpush.msra.mxu0 %v521
    %535 = vmatpush.msra.mxu0 %v520
    %536 = vmatpush.msra.mxu0 %v519
    %537 = vmatpush.msra.mxu0 %v518
    %538 = vmatpush.msra.mxu0 %v517
    %539 = vmatpush.msra.mxu0 %v516
    %540 = vmatpush.msra.mxu0 %v515
    %541 = vmatpush.msra.mxu0 %v514
    %542 = vmatpush.msra.mxu0 %v513
    %543 = vmatpush.msra.mxu0 %v512
    %544 = vmatmul.f32.gmra.mxu0 %v509
    %v545 = vpop.f32.mrf.mxu0
    %v546 = vadd.f32 0.0, %v545
    %547 = vdwg.mxu0
    %v548 = vadd.f32 %v511, %v546
    %v549 = vtanh.pop %v548
    %550 = vst [vmem:[#allocation3 + $0x28] sm:$0xff] %v549
    %v551 = vld [vmem:[#allocation2 + $0x30] sm:$0xff]
    %v552 = vld [vmem:[#allocation4] sm:$0xff]
    %v553 = vld [vmem:[#allocation4 + $0x8] sm:$0xff]
    %v554 = vld [vmem:[#allocation4 + $0x10] sm:$0xff]
    %v555 = vld [vmem:[#allocation4 + $0x18] sm:$0xff]
    %v556 = vld [vmem:[#allocation4 + $0x20] sm:$0xff]
    %v557 = vld [vmem:[#allocation4 + $0x28] sm:$0xff]
    %v558 = vld [vmem:[#allocation4 + $0x30] sm:$0xff]
    %v559 = vld [vmem:[#allocation4 + $0x38] sm:$0xff]
    %v560 = vld [vmem:[#allocation4 + $0x40] sm:$0xff]
    %v561 = vld [vmem:[#allocation4 + $0x48] sm:$0xff]
    %v562 = vld [vmem:[#allocation4 + $0x50] sm:$0xff]
    %v563 = vld [vmem:[#allocation4 + $0x58] sm:$0xff]
    %v564 = vld [vmem:[#allocation4 + $0x60] sm:$0xff]
    %v565 = vld [vmem:[#allocation4 + $0x68] sm:$0xff]
    %v566 = vld [vmem:[#allocation4 + $0x70] sm:$0xff]
    %v567 = vld [vmem:[#allocation4 + $0x78] sm:$0xff]
    %568 = vmatpush.msra.mxu0 %v567
    %569 = vmatpush.msra.mxu0 %v566
    %570 = vmatpush.msra.mxu0 %v565
    %571 = vmatpush.msra.mxu0 %v564
    %572 = vmatpush.msra.mxu0 %v563
    %573 = vmatpush.msra.mxu0 %v562
    %574 = vmatpush.msra.mxu0 %v561
    %575 = vmatpush.msra.mxu0 %v560
    %576 = vmatpush.msra.mxu0 %v559
    %577 = vmatpush.msra.mxu0 %v558
    %578 = vmatpush.msra.mxu0 %v557
    %579 = vmatpush.msra.mxu0 %v556
    %580 = vmatpush.msra.mxu0 %v555
    %581 = vmatpush.msra.mxu0 %v554
    %582 = vmatpush.msra.mxu0 %v553
    %583 = vmatpush.msra.mxu0 %v552
    %584 = vmatmul.f32.gmra.mxu0 %v549
    %v585 = vpop.f32.mrf.mxu0
    %v586 = vadd.f32 0.0, %v585
    %587 = vdwg.mxu0
    %v588 = vadd.f32 %v551, %v586
    %v589 = vtanh.pop %v588
    %590 = vst [vmem:[#allocation3 + $0x30] sm:$0xff] %v589
    %v591 = vld [vmem:[#allocation2 + $0x38] sm:$0xff]
    %v592 = vld [vmem:[#allocation4] sm:$0xff]
    %v593 = vld [vmem:[#allocation4 + $0x8] sm:$0xff]
    %v594 = vld [vmem:[#allocation4 + $0x10] sm:$0xff]
    %v595 = vld [vmem:[#allocation4 + $0x18] sm:$0xff]
    %v596 = vld [vmem:[#allocation4 + $0x20] sm:$0xff]
    %v597 = vld [vmem:[#allocation4 + $0x28] sm:$0xff]
    %v598 = vld [vmem:[#allocation4 + $0x30] sm:$0xff]
    %v599 = vld [vmem:[#allocation4 + $0x38] sm:$0xff]
    %v600 = vld [vmem:[#allocation4 + $0x40] sm:$0xff]
    %v601 = vld [vmem:[#allocation4 + $0x48] sm:$0xff]
    %v602 = vld [vmem:[#allocation4 + $0x50] sm:$0xff]
    %v603 = vld [vmem:[#allocation4 + $0x58] sm:$0xff]
    %v604 = vld [vmem:[#allocation4 + $0x60] sm:$0xff]
    %v605 = vld [vmem:[#allocation4 + $0x68] sm:$0xff]
    %v606 = vld [vmem:[#allocation4 + $0x70] sm:$0xff]
    %v607 = vld [vmem:[#allocation4 + $0x78] sm:$0xff]
    %608 = vmatpush.msra.mxu0 %v607
    %609 = vmatpush.msra.mxu0 %v606
    %610 = vmatpush.msra.mxu0 %v605
    %611 = vmatpush.msra.mxu0 %v604
    %612 = vmatpush.msra.mxu0 %v603
    %613 = vmatpush.msra.mxu0 %v602
    %614 = vmatpush.msra.mxu0 %v601
    %615 = vmatpush.msra.mxu0 %v600
    %616 = vmatpush.msra.mxu0 %v599
    %617 = vmatpush.msra.mxu0 %v598
    %618 = vmatpush.msra.mxu0 %v597
    %619 = vmatpush.msra.mxu0 %v596
    %620 = vmatpush.msra.mxu0 %v595
    %621 = vmatpush.msra.mxu0 %v594
    %622 = vmatpush.msra.mxu0 %v593
    %623 = vmatpush.msra.mxu0 %v592
    %624 = vmatmul.f32.gmra.mxu0 %v589
    %v625 = vpop.f32.mrf.mxu0
    %v626 = vadd.f32 0.0, %v625
    %627 = vdwg.mxu0
    %v628 = vadd.f32 %v591, %v626
    %v629 = vtanh.pop %v628
    %630 = vst [vmem:[#allocation3 + $0x38] sm:$0xff] %v629
    %v631 = vld [vmem:[#allocation3] sm:$0xff]
    %v632 = vld [vmem:[#allocation3 + $0x8] sm:$0xff]
    %v633 = vld [vmem:[#allocation3 + $0x10] sm:$0xff]
    %v634 = vld [vmem:[#allocation3 + $0x18] sm:$0xff]
    %v635 = vld [vmem:[#allocation3 + $0x20] sm:$0xff]
    %v636 = vld [vmem:[#allocation3 + $0x28] sm:$0xff]
    %v637 = vld [vmem:[#allocation3 + $0x30] sm:$0xff]
    %v638 = vld [vmem:[#allocation3 + $0x38] sm:$0xff]
    %v639 = vld [vmem:[%s1 + $0x200] sm:$0xff]
    %v640 = vld [vmem:[%s1 + $0x208] sm:$0xff]
    %v641 = vld [vmem:[%s1 + $0x210] sm:$0xff]
    %v642 = vld [vmem:[%s1 + $0x218] sm:$0xff]
    %v643 = vld [vmem:[%s1 + $0x220] sm:$0xff]
    %v644 = vld [vmem:[%s1 + $0x228] sm:$0xff]
    %v645 = vld [vmem:[%s1 + $0x230] sm:$0xff]
    %v646 = vld [vmem:[%s1 + $0x238] sm:$0xff]
    %v647 = vld [vmem:[%s1 + $0x240] sm:$0xff]
    %v648 = vld [vmem:[%s1 + $0x248] sm:$0xff]
    %v649 = vld [vmem:[%s1 + $0x250] sm:$0xff]
    %v650 = vld [vmem:[%s1 + $0x258] sm:$0xff]
    %v651 = vld [vmem:[%s1 + $0x260] sm:$0xff]
    %v652 = vld [vmem:[%s1 + $0x268] sm:$0xff]
    %v653 = vld [vmem:[%s1 + $0x270] sm:$0xff]
    %v654 = vld [vmem:[%s1 + $0x278] sm:$0xff]
    %v655 = vld [vmem:[%s3 + $0x1] sm:$0x1]
    %v657 = vperm.slane %v655, 0
    %659 = vmatpush.msra.mxu0 %v654
    %660 = vmatpush.msra.mxu0 %v653
    %661 = vmatpush.msra.mxu0 %v652
    %662 = vmatpush.msra.mxu0 %v651
    %663 = vmatpush.msra.mxu0 %v650
    %664 = vmatpush.msra.mxu0 %v649
    %665 = vmatpush.msra.mxu0 %v648
    %666 = vmatpush.msra.mxu0 %v647
    %667 = vmatpush.msra.mxu0 %v646
    %668 = vmatpush.msra.mxu0 %v645
    %669 = vmatpush.msra.mxu0 %v644
    %670 = vmatpush.msra.mxu0 %v643
    %671 = vmatpush.msra.mxu0 %v642
    %672 = vmatpush.msra.mxu0 %v641
    %673 = vmatpush.msra.mxu0 %v640
    %674 = vmatpush.msra.mxu0 %v639
    %675 = vmatmul.f32.gmra.mxu0 %v631
    %v676 = vpop.f32.mrf.mxu0
    %v677 = vadd.f32 %v657, %v676
    %678 = vmatmul.f32.gmra.mxu0 %v632
    %v679 = vpop.f32.mrf.mxu0
    %v680 = vadd.f32 %v657, %v679
    %681 = vmatmul.f32.gmra.mxu0 %v633
    %v682 = vpop.f32.mrf.mxu0
    %v683 = vadd.f32 %v657, %v682
    %684 = vmatmul.f32.gmra.mxu0 %v634
    %v685 = vpop.f32.mrf.mxu0
    %v686 = vadd.f32 %v657, %v685
    %687 = vmatmul.f32.gmra.mxu0 %v635
    %v688 = vpop.f32.mrf.mxu0
    %v689 = vadd.f32 %v657, %v688
    %690 = vmatmul.f32.gmra.mxu0 %v636
    %v691 = vpop.f32.mrf.mxu0
    %v692 = vadd.f32 %v657, %v691
    %693 = vmatmul.f32.gmra.mxu0 %v637
    %v694 = vpop.f32.mrf.mxu0
    %v695 = vadd.f32 %v657, %v694
    %696 = vmatmul.f32.gmra.mxu0 %v638
    %v697 = vpop.f32.mrf.mxu0
    %v698 = vadd.f32 %v657, %v697
    %699 = vdwg.mxu0
    %700 = vst [vmem:[#allocation2] sm:$0xff] %v677
    %701 = vst [vmem:[#allocation2 + $0x8] sm:$0xff] %v680
    %702 = vst [vmem:[#allocation2 + $0x10] sm:$0xff] %v683
    %703 = vst [vmem:[#allocation2 + $0x18] sm:$0xff] %v686
    %704 = vst [vmem:[#allocation2 + $0x20] sm:$0xff] %v689
    %705 = vst [vmem:[#allocation2 + $0x28] sm:$0xff] %v692
    %706 = vst [vmem:[#allocation2 + $0x30] sm:$0xff] %v695
    %707 = vst [vmem:[#allocation2 + $0x38] sm:$0xff] %v698
    %v708 = vld [vmem:[#allocation2] sm:$0xff]
    %v709 = vld [vmem:[#allocation4 + $0x80] sm:$0xff]
    %v710 = vld [vmem:[#allocation4 + $0x88] sm:$0xff]
    %v711 = vld [vmem:[#allocation4 + $0x90] sm:$0xff]
    %v712 = vld [vmem:[#allocation4 + $0x98] sm:$0xff]
    %v713 = vld [vmem:[#allocation4 + $0xa0] sm:$0xff]
    %v714 = vld [vmem:[#allocation4 + $0xa8] sm:$0xff]
    %v715 = vld [vmem:[#allocation4 + $0xb0] sm:$0xff]
    %v716 = vld [vmem:[#allocation4 + $0xb8] sm:$0xff]
    %v717 = vld [vmem:[#allocation4 + $0xc0] sm:$0xff]
    %v718 = vld [vmem:[#allocation4 + $0xc8] sm:$0xff]
    %v719 = vld [vmem:[#allocation4 + $0xd0] sm:$0xff]
    %v720 = vld [vmem:[#allocation4 + $0xd8] sm:$0xff]
    %v721 = vld [vmem:[#allocation4 + $0xe0] sm:$0xff]
    %v722 = vld [vmem:[#allocation4 + $0xe8] sm:$0xff]
    %v723 = vld [vmem:[#allocation4 + $0xf0] sm:$0xff]
    %v724 = vld [vmem:[#allocation4 + $0xf8] sm:$0xff]
    %725 = vmatpush.msra.mxu0 %v724
    %726 = vmatpush.msra.mxu0 %v723
    %727 = vmatpush.msra.mxu0 %v722
    %728 = vmatpush.msra.mxu0 %v721
    %729 = vmatpush.msra.mxu0 %v720
    %730 = vmatpush.msra.mxu0 %v719
    %731 = vmatpush.msra.mxu0 %v718
    %732 = vmatpush.msra.mxu0 %v717
    %733 = vmatpush.msra.mxu0 %v716
    %734 = vmatpush.msra.mxu0 %v715
    %735 = vmatpush.msra.mxu0 %v714
    %736 = vmatpush.msra.mxu0 %v713
    %737 = vmatpush.msra.mxu0 %v712
    %738 = vmatpush.msra.mxu0 %v711
    %739 = vmatpush.msra.mxu0 %v710
    %740 = vmatpush.msra.mxu0 %v709
    %741 = vmatmul.f32.gmra.mxu0 0.0
    %v742 = vpop.f32.mrf.mxu0
    %v743 = vadd.f32 0.0, %v742
    %744 = vdwg.mxu0
    %v745 = vadd.f32 %v708, %v743
    %v746 = vtanh.pop %v745
    %747 = vst [vmem:[#allocation3] sm:$0xff] %v746
    %v748 = vld [vmem:[#allocation2 + $0x8] sm:$0xff]
    %v749 = vld [vmem:[#allocation4 + $0x80] sm:$0xff]
    %v750 = vld [vmem:[#allocation4 + $0x88] sm:$0xff]
    %v751 = vld [vmem:[#allocation4 + $0x90] sm:$0xff]
    %v752 = vld [vmem:[#allocation4 + $0x98] sm:$0xff]
    %v753 = vld [vmem:[#allocation4 + $0xa0] sm:$0xff]
    %v754 = vld [vmem:[#allocation4 + $0xa8] sm:$0xff]
    %v755 = vld [vmem:[#allocation4 + $0xb0] sm:$0xff]
    %v756 = vld [vmem:[#allocation4 + $0xb8] sm:$0xff]
    %v757 = vld [vmem:[#allocation4 + $0xc0] sm:$0xff]
    %v758 = vld [vmem:[#allocation4 + $0xc8] sm:$0xff]
    %v759 = vld [vmem:[#allocation4 + $0xd0] sm:$0xff]
    %v760 = vld [vmem:[#allocation4 + $0xd8] sm:$0xff]
    %v761 = vld [vmem:[#allocation4 + $0xe0] sm:$0xff]
    %v762 = vld [vmem:[#allocation4 + $0xe8] sm:$0xff]
    %v763 = vld [vmem:[#allocation4 + $0xf0] sm:$0xff]
    %v764 = vld [vmem:[#allocation4 + $0xf8] sm:$0xff]
    %765 = vmatpush.msra.mxu0 %v764
    %766 = vmatpush.msra.mxu0 %v763
    %767 = vmatpush.msra.mxu0 %v762
    %768 = vmatpush.msra.mxu0 %v761
    %769 = vmatpush.msra.mxu0 %v760
    %770 = vmatpush.msra.mxu0 %v759
    %771 = vmatpush.msra.mxu0 %v758
    %772 = vmatpush.msra.mxu0 %v757
    %773 = vmatpush.msra.mxu0 %v756
    %774 = vmatpush.msra.mxu0 %v755
    %775 = vmatpush.msra.mxu0 %v754
    %776 = vmatpush.msra.mxu0 %v753
    %777 = vmatpush.msra.mxu0 %v752
    %778 = vmatpush.msra.mxu0 %v751
    %779 = vmatpush.msra.mxu0 %v750
    %780 = vmatpush.msra.mxu0 %v749
    %781 = vmatmul.f32.gmra.mxu0 %v746
    %v782 = vpop.f32.mrf.mxu0
    %v783 = vadd.f32 0.0, %v782
    %784 = vdwg.mxu0
    %v785 = vadd.f32 %v748, %v783
    %v786 = vtanh.pop %v785
    %787 = vst [vmem:[#allocation3 + $0x8] sm:$0xff] %v786
    %v788 = vld [vmem:[#allocation2 + $0x10] sm:$0xff]
    %v789 = vld [vmem:[#allocation4 + $0x80] sm:$0xff]
    %v790 = vld [vmem:[#allocation4 + $0x88] sm:$0xff]
    %v791 = vld [vmem:[#allocation4 + $0x90] sm:$0xff]
    %v792 = vld [vmem:[#allocation4 + $0x98] sm:$0xff]
    %v793 = vld [vmem:[#allocation4 + $0xa0] sm:$0xff]
    %v794 = vld [vmem:[#allocation4 + $0xa8] sm:$0xff]
    %v795 = vld [vmem:[#allocation4 + $0xb0] sm:$0xff]
    %v796 = vld [vmem:[#allocation4 + $0xb8] sm:$0xff]
    %v797 = vld [vmem:[#allocation4 + $0xc0] sm:$0xff]
    %v798 = vld [vmem:[#allocation4 + $0xc8] sm:$0xff]
    %v799 = vld [vmem:[#allocation4 + $0xd0] sm:$0xff]
    %v800 = vld [vmem:[#allocation4 + $0xd8] sm:$0xff]
    %v801 = vld [vmem:[#allocation4 + $0xe0] sm:$0xff]
    %v802 = vld [vmem:[#allocation4 + $0xe8] sm:$0xff]
    %v803 = vld [vmem:[#allocation4 + $0xf0] sm:$0xff]
    %v804 = vld [vmem:[#allocation4 + $0xf8] sm:$0xff]
    %805 = vmatpush.msra.mxu0 %v804
    %806 = vmatpush.msra.mxu0 %v803
    %807 = vmatpush.msra.mxu0 %v802
    %808 = vmatpush.msra.mxu0 %v801
    %809 = vmatpush.msra.mxu0 %v800
    %810 = vmatpush.msra.mxu0 %v799
    %811 = vmatpush.msra.mxu0 %v798
    %812 = vmatpush.msra.mxu0 %v797
    %813 = vmatpush.msra.mxu0 %v796
    %814 = vmatpush.msra.mxu0 %v795
    %815 = vmatpush.msra.mxu0 %v794
    %816 = vmatpush.msra.mxu0 %v793
    %817 = vmatpush.msra.mxu0 %v792
    %818 = vmatpush.msra.mxu0 %v791
    %819 = vmatpush.msra.mxu0 %v790
    %820 = vmatpush.msra.mxu0 %v789
    %821 = vmatmul.f32.gmra.mxu0 %v786
    %v822 = vpop.f32.mrf.mxu0
    %v823 = vadd.f32 0.0, %v822
    %824 = vdwg.mxu0
    %v825 = vadd.f32 %v788, %v823
    %v826 = vtanh.pop %v825
    %827 = vst [vmem:[#allocation3 + $0x10] sm:$0xff] %v826
    %v828 = vld [vmem:[#allocation2 + $0x18] sm:$0xff]
    %v829 = vld [vmem:[#allocation4 + $0x80] sm:$0xff]
    %v830 = vld [vmem:[#allocation4 + $0x88] sm:$0xff]
    %v831 = vld [vmem:[#allocation4 + $0x90] sm:$0xff]
    %v832 = vld [vmem:[#allocation4 + $0x98] sm:$0xff]
    %v833 = vld [vmem:[#allocation4 + $0xa0] sm:$0xff]
    %v834 = vld [vmem:[#allocation4 + $0xa8] sm:$0xff]
    %v835 = vld [vmem:[#allocation4 + $0xb0] sm:$0xff]
    %v836 = vld [vmem:[#allocation4 + $0xb8] sm:$0xff]
    %v837 = vld [vmem:[#allocation4 + $0xc0] sm:$0xff]
    %v838 = vld [vmem:[#allocation4 + $0xc8] sm:$0xff]
    %v839 = vld [vmem:[#allocation4 + $0xd0] sm:$0xff]
    %v840 = vld [vmem:[#allocation4 + $0xd8] sm:$0xff]
    %v841 = vld [vmem:[#allocation4 + $0xe0] sm:$0xff]
    %v842 = vld [vmem:[#allocation4 + $0xe8] sm:$0xff]
    %v843 = vld [vmem:[#allocation4 + $0xf0] sm:$0xff]
    %v844 = vld [vmem:[#allocation4 + $0xf8] sm:$0xff]
    %845 = vmatpush.msra.mxu0 %v844
    %846 = vmatpush.msra.mxu0 %v843
    %847 = vmatpush.msra.mxu0 %v842
    %848 = vmatpush.msra.mxu0 %v841
    %849 = vmatpush.msra.mxu0 %v840
    %850 = vmatpush.msra.mxu0 %v839
    %851 = vmatpush.msra.mxu0 %v838
    %852 = vmatpush.msra.mxu0 %v837
    %853 = vmatpush.msra.mxu0 %v836
    %854 = vmatpush.msra.mxu0 %v835
    %855 = vmatpush.msra.mxu0 %v834
    %856 = vmatpush.msra.mxu0 %v833
    %857 = vmatpush.msra.mxu0 %v832
    %858 = vmatpush.msra.mxu0 %v831
    %859 = vmatpush.msra.mxu0 %v830
    %860 = vmatpush.msra.mxu0 %v829
    %861 = vmatmul.f32.gmra.mxu0 %v826
    %v862 = vpop.f32.mrf.mxu0
    %v863 = vadd.f32 0.0, %v862
    %864 = vdwg.mxu0
    %v865 = vadd.f32 %v828, %v863
    %v866 = vtanh.pop %v865
    %867 = vst [vmem:[#allocation3 + $0x18] sm:$0xff] %v866
    %v868 = vld [vmem:[#allocation2 + $0x20] sm:$0xff]
    %v869 = vld [vmem:[#allocation4 + $0x80] sm:$0xff]
    %v870 = vld [vmem:[#allocation4 + $0x88] sm:$0xff]
    %v871 = vld [vmem:[#allocation4 + $0x90] sm:$0xff]
    %v872 = vld [vmem:[#allocation4 + $0x98] sm:$0xff]
    %v873 = vld [vmem:[#allocation4 + $0xa0] sm:$0xff]
    %v874 = vld [vmem:[#allocation4 + $0xa8] sm:$0xff]
    %v875 = vld [vmem:[#allocation4 + $0xb0] sm:$0xff]
    %v876 = vld [vmem:[#allocation4 + $0xb8] sm:$0xff]
    %v877 = vld [vmem:[#allocation4 + $0xc0] sm:$0xff]
    %v878 = vld [vmem:[#allocation4 + $0xc8] sm:$0xff]
    %v879 = vld [vmem:[#allocation4 + $0xd0] sm:$0xff]
    %v880 = vld [vmem:[#allocation4 + $0xd8] sm:$0xff]
    %v881 = vld [vmem:[#allocation4 + $0xe0] sm:$0xff]
    %v882 = vld [vmem:[#allocation4 + $0xe8] sm:$0xff]
    %v883 = vld [vmem:[#allocation4 + $0xf0] sm:$0xff]
    %v884 = vld [vmem:[#allocation4 + $0xf8] sm:$0xff]
    %885 = vmatpush.msra.mxu0 %v884
    %886 = vmatpush.msra.mxu0 %v883
    %887 = vmatpush.msra.mxu0 %v882
    %888 = vmatpush.msra.mxu0 %v881
    %889 = vmatpush.msra.mxu0 %v880
    %890 = vmatpush.msra.mxu0 %v879
    %891 = vmatpush.msra.mxu0 %v878
    %892 = vmatpush.msra.mxu0 %v877
    %893 = vmatpush.msra.mxu0 %v876
    %894 = vmatpush.msra.mxu0 %v875
    %895 = vmatpush.msra.mxu0 %v874
    %896 = vmatpush.msra.mxu0 %v873
    %897 = vmatpush.msra.mxu0 %v872
    %898 = vmatpush.msra.mxu0 %v871
    %899 = vmatpush.msra.mxu0 %v870
    %900 = vmatpush.msra.mxu0 %v869
    %901 = vmatmul.f32.gmra.mxu0 %v866
    %v902 = vpop.f32.mrf.mxu0
    %v903 = vadd.f32 0.0, %v902
    %904 = vdwg.mxu0
    %v905 = vadd.f32 %v868, %v903
    %v906 = vtanh.pop %v905
    %907 = vst [vmem:[#allocation3 + $0x20] sm:$0xff] %v906
    %v908 = vld [vmem:[#allocation2 + $0x28] sm:$0xff]
    %v909 = vld [vmem:[#allocation4 + $0x80] sm:$0xff]
    %v910 = vld [vmem:[#allocation4 + $0x88] sm:$0xff]
    %v911 = vld [vmem:[#allocation4 + $0x90] sm:$0xff]
    %v912 = vld [vmem:[#allocation4 + $0x98] sm:$0xff]
    %v913 = vld [vmem:[#allocation4 + $0xa0] sm:$0xff]
    %v914 = vld [vmem:[#allocation4 + $0xa8] sm:$0xff]
    %v915 = vld [vmem:[#allocation4 + $0xb0] sm:$0xff]
    %v916 = vld [vmem:[#allocation4 + $0xb8] sm:$0xff]
    %v917 = vld [vmem:[#allocation4 + $0xc0] sm:$0xff]
    %v918 = vld [vmem:[#allocation4 + $0xc8] sm:$0xff]
    %v919 = vld [vmem:[#allocation4 + $0xd0] sm:$0xff]
    %v920 = vld [vmem:[#allocation4 + $0xd8] sm:$0xff]
    %v921 = vld [vmem:[#allocation4 + $0xe0] sm:$0xff]
    %v922 = vld [vmem:[#allocation4 + $0xe8] sm:$0xff]
    %v923 = vld [vmem:[#allocation4 + $0xf0] sm:$0xff]
    %v924 = vld [vmem:[#allocation4 + $0xf8] sm:$0xff]
    %925 = vmatpush.msra.mxu0 %v924
    %926 = vmatpush.msra.mxu0 %v923
    %927 = vmatpush.msra.mxu0 %v922
    %928 = vmatpush.msra.mxu0 %v921
    %929 = vmatpush.msra.mxu0 %v920
    %930 = vmatpush.msra.mxu0 %v919
    %931 = vmatpush.msra.mxu0 %v918
    %932 = vmatpush.msra.mxu0 %v917
    %933 = vmatpush.msra.mxu0 %v916
    %934 = vmatpush.msra.mxu0 %v915
    %935 = vmatpush.msra.mxu0 %v914
    %936 = vmatpush.msra.mxu0 %v913
    %937 = vmatpush.msra.mxu0 %v912
    %938 = vmatpush.msra.mxu0 %v911
    %939 = vmatpush.msra.mxu0 %v910
    %940 = vmatpush.msra.mxu0 %v909
    %941 = vmatmul.f32.gmra.mxu0 %v906
    %v942 = vpop.f32.mrf.mxu0
    %v943 = vadd.f32 0.0, %v942
    %944 = vdwg.mxu0
    %v945 = vadd.f32 %v908, %v943
    %v946 = vtanh.pop %v945
    %947 = vst [vmem:[#allocation3 + $0x28] sm:$0xff] %v946
    %v948 = vld [vmem:[#allocation2 + $0x30] sm:$0xff]
    %v949 = vld [vmem:[#allocation4 + $0x80] sm:$0xff]
    %v950 = vld [vmem:[#allocation4 + $0x88] sm:$0xff]
    %v951 = vld [vmem:[#allocation4 + $0x90] sm:$0xff]
    %v952 = vld [vmem:[#allocation4 + $0x98] sm:$0xff]
    %v953 = vld [vmem:[#allocation4 + $0xa0] sm:$0xff]
    %v954 = vld [vmem:[#allocation4 + $0xa8] sm:$0xff]
    %v955 = vld [vmem:[#allocation4 + $0xb0] sm:$0xff]
    %v956 = vld [vmem:[#allocation4 + $0xb8] sm:$0xff]
    %v957 = vld [vmem:[#allocation4 + $0xc0] sm:$0xff]
    %v958 = vld [vmem:[#allocation4 + $0xc8] sm:$0xff]
    %v959 = vld [vmem:[#allocation4 + $0xd0] sm:$0xff]
    %v960 = vld [vmem:[#allocation4 + $0xd8] sm:$0xff]
    %v961 = vld [vmem:[#allocation4 + $0xe0] sm:$0xff]
    %v962 = vld [vmem:[#allocation4 + $0xe8] sm:$0xff]
    %v963 = vld [vmem:[#allocation4 + $0xf0] sm:$0xff]
    %v964 = vld [vmem:[#allocation4 + $0xf8] sm:$0xff]
    %965 = vmatpush.msra.mxu0 %v964
    %966 = vmatpush.msra.mxu0 %v963
    %967 = vmatpush.msra.mxu0 %v962
    %968 = vmatpush.msra.mxu0 %v961
    %969 = vmatpush.msra.mxu0 %v960
    %970 = vmatpush.msra.mxu0 %v959
    %971 = vmatpush.msra.mxu0 %v958
    %972 = vmatpush.msra.mxu0 %v957
    %973 = vmatpush.msra.mxu0 %v956
    %974 = vmatpush.msra.mxu0 %v955
    %975 = vmatpush.msra.mxu0 %v954
    %976 = vmatpush.msra.mxu0 %v953
    %977 = vmatpush.msra.mxu0 %v952
    %978 = vmatpush.msra.mxu0 %v951
    %979 = vmatpush.msra.mxu0 %v950
    %980 = vmatpush.msra.mxu0 %v949
    %981 = vmatmul.f32.gmra.mxu0 %v946
    %v982 = vpop.f32.mrf.mxu0
    %v983 = vadd.f32 0.0, %v982
    %984 = vdwg.mxu0
    %v985 = vadd.f32 %v948, %v983
    %v986 = vtanh.pop %v985
    %987 = vst [vmem:[#allocation3 + $0x30] sm:$0xff] %v986
    %v988 = vld [vmem:[#allocation2 + $0x38] sm:$0xff]
    %v989 = vld [vmem:[#allocation4 + $0x80] sm:$0xff]
    %v990 = vld [vmem:[#allocation4 + $0x88] sm:$0xff]
    %v991 = vld [vmem:[#allocation4 + $0x90] sm:$0xff]
    %v992 = vld [vmem:[#allocation4 + $0x98] sm:$0xff]
    %v993 = vld [vmem:[#allocation4 + $0xa0] sm:$0xff]
    %v994 = vld [vmem:[#allocation4 + $0xa8] sm:$0xff]
    %v995 = vld [vmem:[#allocation4 + $0xb0] sm:$0xff]
    %v996 = vld [vmem:[#allocation4 + $0xb8] sm:$0xff]
    %v997 = vld [vmem:[#allocation4 + $0xc0] sm:$0xff]
    %v998 = vld [vmem:[#allocation4 + $0xc8] sm:$0xff]
    %v999 = vld [vmem:[#allocation4 + $0xd0] sm:$0xff]
    %v1000 = vld [vmem:[#allocation4 + $0xd8] sm:$0xff]
    %v1001 = vld [vmem:[#allocation4 + $0xe0] sm:$0xff]
    %v1002 = vld [vmem:[#allocation4 + $0xe8] sm:$0xff]
    %v1003 = vld [vmem:[#allocation4 + $0xf0] sm:$0xff]
    %v1004 = vld [vmem:[#allocation4 + $0xf8] sm:$0xff]
    %1005 = vmatpush.msra.mxu0 %v1004
    %1006 = vmatpush.msra.mxu0 %v1003
    %1007 = vmatpush.msra.mxu0 %v1002
    %1008 = vmatpush.msra.mxu0 %v1001
    %1009 = vmatpush.msra.mxu0 %v1000
    %1010 = vmatpush.msra.mxu0 %v999
    %1011 = vmatpush.msra.mxu0 %v998
    %1012 = vmatpush.msra.mxu0 %v997
    %1013 = vmatpush.msra.mxu0 %v996
    %1014 = vmatpush.msra.mxu0 %v995
    %1015 = vmatpush.msra.mxu0 %v994
    %1016 = vmatpush.msra.mxu0 %v993
    %1017 = vmatpush.msra.mxu0 %v992
    %1018 = vmatpush.msra.mxu0 %v991
    %1019 = vmatpush.msra.mxu0 %v990
    %1020 = vmatpush.msra.mxu0 %v989
    %1021 = vmatmul.f32.gmra.mxu0 %v986
    %v1022 = vpop.f32.mrf.mxu0
    %v1023 = vadd.f32 0.0, %v1022
    %1024 = vdwg.mxu0
    %v1025 = vadd.f32 %v988, %v1023
    %v1026 = vtanh.pop %v1025
    %1027 = vst [vmem:[#allocation3 + $0x38] sm:$0xff] %v1026
    %v1028 = vld [vmem:[#allocation3] sm:$0xff]
    %v1029 = vld [vmem:[#allocation3 + $0x8] sm:$0xff]
    %v1030 = vld [vmem:[#allocation3 + $0x10] sm:$0xff]
    %v1031 = vld [vmem:[#allocation3 + $0x18] sm:$0xff]
    %v1032 = vld [vmem:[#allocation3 + $0x20] sm:$0xff]
    %v1033 = vld [vmem:[#allocation3 + $0x28] sm:$0xff]
    %v1034 = vld [vmem:[#allocation3 + $0x30] sm:$0xff]
    %v1035 = vld [vmem:[#allocation3 + $0x38] sm:$0xff]
    %v1036 = vld [vmem:[%s4] sm:$0xff]
    %v1037 = vld [vmem:[%s4 + $0x8] sm:$0xff]
    %v1038 = vld [vmem:[%s4 + $0x10] sm:$0xff]
    %v1039 = vld [vmem:[%s4 + $0x18] sm:$0xff]
    %v1040 = vld [vmem:[%s4 + $0x20] sm:$0xff]
    %v1041 = vld [vmem:[%s4 + $0x28] sm:$0xff]
    %v1042 = vld [vmem:[%s4 + $0x30] sm:$0xff]
    %v1043 = vld [vmem:[%s4 + $0x38] sm:$0xff]
    %v1044 = vld [vmem:[%s4 + $0x40] sm:$0xff]
    %v1045 = vld [vmem:[%s4 + $0x48] sm:$0xff]
    %v1046 = vld [vmem:[%s4 + $0x50] sm:$0xff]
    %v1047 = vld [vmem:[%s4 + $0x58] sm:$0xff]
    %v1048 = vld [vmem:[%s4 + $0x60] sm:$0xff]
    %v1049 = vld [vmem:[%s4 + $0x68] sm:$0xff]
    %v1050 = vld [vmem:[%s4 + $0x70] sm:$0xff]
    %v1051 = vld [vmem:[%s4 + $0x78] sm:$0xff]
    %v1052 = vld [vmem:[%s5] sm:$0x1]
    %v1054 = vperm.slane %v1052, 0
    %1056 = vmatpush.msra.mxu0 %v1051
    %1057 = vmatpush.msra.mxu0 %v1050
    %1058 = vmatpush.msra.mxu0 %v1049
    %1059 = vmatpush.msra.mxu0 %v1048
    %1060 = vmatpush.msra.mxu0 %v1047
    %1061 = vmatpush.msra.mxu0 %v1046
    %1062 = vmatpush.msra.mxu0 %v1045
    %1063 = vmatpush.msra.mxu0 %v1044
    %1064 = vmatpush.msra.mxu0 %v1043
    %1065 = vmatpush.msra.mxu0 %v1042
    %1066 = vmatpush.msra.mxu0 %v1041
    %1067 = vmatpush.msra.mxu0 %v1040
    %1068 = vmatpush.msra.mxu0 %v1039
    %1069 = vmatpush.msra.mxu0 %v1038
    %1070 = vmatpush.msra.mxu0 %v1037
    %1071 = vmatpush.msra.mxu0 %v1036
    %1072 = vmatmul.f32.gmra.mxu0 %v1028
    %v1073 = vpop.f32.mrf.mxu0
    %v1074 = vadd.f32 %v1054, %v1073
    %1075 = vmatmul.f32.gmra.mxu0 %v1029
    %v1076 = vpop.f32.mrf.mxu0
    %v1077 = vadd.f32 %v1054, %v1076
    %1078 = vmatmul.f32.gmra.mxu0 %v1030
    %v1079 = vpop.f32.mrf.mxu0
    %v1080 = vadd.f32 %v1054, %v1079
    %1081 = vmatmul.f32.gmra.mxu0 %v1031
    %v1082 = vpop.f32.mrf.mxu0
    %v1083 = vadd.f32 %v1054, %v1082
    %1084 = vmatmul.f32.gmra.mxu0 %v1032
    %v1085 = vpop.f32.mrf.mxu0
    %v1086 = vadd.f32 %v1054, %v1085
    %1087 = vmatmul.f32.gmra.mxu0 %v1033
    %v1088 = vpop.f32.mrf.mxu0
    %v1089 = vadd.f32 %v1054, %v1088
    %1090 = vmatmul.f32.gmra.mxu0 %v1034
    %v1091 = vpop.f32.mrf.mxu0
    %v1092 = vadd.f32 %v1054, %v1091
    %1093 = vmatmul.f32.gmra.mxu0 %v1035
    %v1094 = vpop.f32.mrf.mxu0
    %v1095 = vadd.f32 %v1054, %v1094
    %1096 = vdwg.mxu0
    %1097 = vst [vmem:[%s6] sm:$0xff] %v1074
    %1098 = vst [vmem:[%s6 + $0x8] sm:$0xff] %v1077
    %1099 = vst [vmem:[%s6 + $0x10] sm:$0xff] %v1080
    %1100 = vst [vmem:[%s6 + $0x18] sm:$0xff] %v1083
    %1101 = vst [vmem:[%s6 + $0x20] sm:$0xff] %v1086
    %1102 = vst [vmem:[%s6 + $0x28] sm:$0xff] %v1089
    %1103 = vst [vmem:[%s6 + $0x30] sm:$0xff] %v1092
    %1104 = vst [vmem:[%s6 + $0x38] sm:$0xff] %v1095
    // Predicated region
    $region30: #{rnn_model_forward.1} parent=1 // pred_check
      _
    $region31: #{rnn_model_forward.1} parent=1 // pred_check_branch
      %1106 = sbr.rel (0) target = $region33
    $region32: #{rnn_model_forward.1} parent=1 // pred_region
      _
    $region33: #{rnn_model_forward.1} parent=1 // pred_fallthru
      _
    // Predicated region
    $region34: #{rnn_model_forward.1} parent=1 // pred_check
      _
    $region35: #{rnn_model_forward.1} parent=1 // pred_check_branch
      %1108 = sbr.rel (0) target = $region37
    $region36: #{rnn_model_forward.1} parent=1 // pred_region
      _
    $region37: #{rnn_model_forward.1} parent=1 // pred_fallthru
      _
    %1109 = vsyncpa [#allocation5], 1

</llo_original>
